<compile_context>
chip_gen: v6e
topology: v6e:2x2x1
jax: 0.10.0
libtpu: 0.0.40
codegen_flags: <defaults>
</compile_context>

<pallas_src>
import functools

import jax
import jax.numpy as jnp
from jax.experimental import pallas as pl
from jax.experimental.pallas import tpu as pltpu


def _round_up(v, m):
    return ((v + m - 1) // m) * m


# ----------------------------------------------------------------------------
# Fused kernel: conv1+BN+ReLU -> conv2+BN+ReLU -> GAP -> folded head
# ----------------------------------------------------------------------------
def _fused_kernel(x_ref, w1m_ref, b1r_ref, m1_ref, w2s_ref, b2r_ref, m2_ref,
                  wh_ref, bh_ref, out_ref, p1_ref, *, C, KH, KW, Wp, J):
    # ---- stage 1: Conv3d(3,3,(10,1,1),s=(10,1,1)) + BN + ReLU as one matmul.
    #      Columns = flattened, padded-by-2 spatial positions (lane axis).
    h1 = jnp.dot(w1m_ref[...], x_ref[0], preferred_element_type=jnp.float32)
    # bias + ReLU everywhere (this also produces conv1's padded ring = ReLU(b1));
    # mask1 zeroes conv2's zero-padding ring and the lane-padding tail.
    p1_ref[...] = m1_ref[...] * jnp.maximum(h1 + b1r_ref[...], 0.0)

    # ---- stage 2: Conv3d(3,3,(5,3,3),p=(0,1,1)) + BN + ReLU as KH*KW shifted-
    #      window matmuls contracting over (in_channel, temporal) = C*T1 rows.
    acc = jnp.zeros((C, J), jnp.float32)
    for kh in range(KH):
        for kw in range(KW):
            off = kh * Wp + kw
            acc = acc + jnp.dot(w2s_ref[kh * KW + kw],
                                p1_ref[:, off:off + J],
                                preferred_element_type=jnp.float32)
    # mask2 keeps only the (H+2)x(W+2) valid output positions.
    feat = m2_ref[...] * jnp.maximum(acc + b2r_ref[...], 0.0)          # (C, J)

    # ---- GAP + (surrogate backbone lift @ classifier), pre-folded on host. ----
    pooled = jnp.sum(feat, axis=-1, keepdims=True)                     # (C, 1)
    out_ref[0] = (jnp.sum(pooled * wh_ref[...], axis=0, keepdims=True)
                  + bh_ref[...])                                       # (1, nc)


# ----------------------------------------------------------------------------
# Host-side parameter preparation (BN folding, matmul-form weights, masks, head fold)
# ----------------------------------------------------------------------------
def prepare_params(params, *, T, H, W, num_classes):
    C = 3
    KT1, ST1 = 10, 10
    KT2, KH, KW = 5, 3, 3
    T1 = (T - KT1) // ST1 + 1
    assert T == T1 * ST1, "conv1 has stride == kernel: T must be a multiple of 10"
    assert T1 - KT2 + 1 == 1, "temporal extent must collapse to 1 before squeeze(dim=2)"

    eps = 1e-5
    s1 = params["bn1_gamma"] / jnp.sqrt(params["bn1_var"] + eps)
    b1 = params["bn1_beta"] - params["bn1_mean"] * s1
    s2 = params["bn2_gamma"] / jnp.sqrt(params["bn2_var"] + eps)
    b2 = params["bn2_beta"] - params["bn2_mean"] * s2

    w1 = params["w1"][:, :, :, 0, 0]                        # (C, C, KT1), 1x1 spatial
    w1f = w1 * s1[:, None, None]                            # BN1 folded into conv1
    w2f = params["w2"] * s2[:, None, None, None, None]      # BN2 folded into conv2

    # geometry of the flattened, padded-by-2 spatial plane (lane axis)
    Hp, Wp = H + 4, W + 4                                   # conv1 pad 1 + conv2 pad 1
    HO, WO = H + 2, W + 2                                   # final spatial extent
    max_off = (KH - 1) * Wp + (KW - 1)
    J = _round_up((HO - 1) * Wp + WO, 128)                  # conv2 output columns
    P1_COLS = _round_up(max(Hp * Wp, max_off + J), 128)     # conv2 input columns

    # stage 1 as one matmul: (C*T1, C*T) @ (C*T, P1_COLS)
    tt = jnp.arange(T)
    blk = (tt[None, :] // ST1 == jnp.arange(T1)[:, None]).astype(jnp.float32)
    w1e = w1f[:, :, tt % KT1]                                           # (C, C, T)
    w1m = (w1e[:, None, :, :] * blk[None, :, None, :]).reshape(C * T1, C * T)
    b1rows = jnp.repeat(b1, T1)[:, None]                                # (C*T1, 1)

    # stage 2: per-(kh,kw) weight matrices over the (ci, kt) contraction axis
    w2s = jnp.transpose(w2f, (3, 4, 0, 1, 2)).reshape(KH * KW, C, C * KT2)
    b2rows = b2[:, None]                                                # (C, 1)

    # edge masks (replace per-stage padding of intermediates)
    q = jnp.arange(P1_COLS)
    hp, wp = q // Wp, q % Wp
    mask1 = ((q < Hp * Wp) & (hp >= 1) & (hp <= Hp - 2)
             & (wp >= 1) & (wp <= Wp - 2)).astype(jnp.float32)[None, :]
    j = jnp.arange(J)
    mask2 = ((j // Wp < HO) & (j % Wp < WO)).astype(jnp.float32)[None, :]

    # TODO(synk): timm 'resnet10t' pretrained backbone has no clean in-script
    # Pallas equivalent; surrogate = GAP(3) -> linear lift to 512 features, and it
    # is pre-folded with the classifier (GAP divisor folded into the weights too).
    wh = (params["w_bb"] @ params["w_cls"]) / float(HO * WO)            # (C, nc)
    bh = (params["b_bb"] @ params["w_cls"] + params["b_cls"])[None, :]  # (1, nc)

    return dict(w1m=w1m, b1rows=b1rows, mask1=mask1, w2s=w2s, b2rows=b2rows,
                mask2=mask2, wh=wh, bh=bh,
                C=C, T=T, T1=T1, KH=KH, KW=KW, Hp=Hp, Wp=Wp,
                P1_COLS=P1_COLS, J=J, num_classes=num_classes)


# ----------------------------------------------------------------------------
# Forward pass: one fused pallas_call over the batch
# ----------------------------------------------------------------------------
def conv_embeding_v3_forward(x, prep):
    N, C, T, H, W = x.shape
    assert C == prep["C"] and T == prep["T"]
    Hp, Wp = prep["Hp"], prep["Wp"]
    P1_COLS, J = prep["P1_COLS"], prep["J"]
    T1, KH, KW = prep["T1"], prep["KH"], prep["KW"]
    nc = prep["num_classes"]

    # One-time layout prep of the raw input: pad spatially by 2 (conv1 + conv2
    # padding), flatten the plane onto the lane axis, pad to a lane-dense width.
    xp = jnp.pad(x, ((0, 0), (0, 0), (0, 0), (2, 2), (2, 2)))
    xf = xp.reshape(N, C * T, Hp * Wp)
    xf = jnp.pad(xf, ((0, 0), (0, 0), (0, P1_COLS - Hp * Wp)))

    kernel = functools.partial(_fused_kernel, C=C, KH=KH, KW=KW, Wp=Wp, J=J)
    out = pl.pallas_call(
        kernel,
        out_shape=jax.ShapeDtypeStruct((N, 1, nc), jnp.float32),
        grid=(N,),
        in_specs=[
            pl.BlockSpec((1, C * T, P1_COLS), lambda n: (n, 0, 0)),   # x (flattened)
            pl.BlockSpec((C * T1, C * T), lambda n: (0, 0)),          # stage-1 weights
            pl.BlockSpec((C * T1, 1), lambda n: (0, 0)),              # stage-1 bias rows
            pl.BlockSpec((1, P1_COLS), lambda n: (0, 0)),             # stage-1 edge mask
            pl.BlockSpec((KH * KW, C, C * T1), lambda n: (0, 0, 0)),  # stage-2 weights
            pl.BlockSpec((C, 1), lambda n: (0, 0)),                   # stage-2 bias rows
            pl.BlockSpec((1, J), lambda n: (0, 0)),                   # stage-2 edge mask
            pl.BlockSpec((C, nc), lambda n: (0, 0)),                  # folded head weight
            pl.BlockSpec((1, nc), lambda n: (0, 0)),                  # folded head bias
        ],
        out_specs=pl.BlockSpec((1, 1, nc), lambda n: (n, 0, 0)),
        scratch_shapes=[pltpu.VMEM((C * T1, P1_COLS), jnp.float32)],
        compiler_params=pltpu.CompilerParams(
            dimension_semantics=("parallel",)),
    )(xf, prep["w1m"], prep["b1rows"], prep["mask1"], prep["w2s"],
      prep["b2rows"], prep["mask2"], prep["wh"], prep["bh"])
    return out.reshape(N, nc)


# ----------------------------------------------------------------------------
if __name__ == "__main__":
    num_classes = 10
    key = jax.random.PRNGKey(0)
    ks = jax.random.split(key, 8)

    # Smallest input consistent with the temporal arithmetic:
    # T=50 -> conv1(kt=10,s=10) -> 5 -> conv2(kt=5,s=1) -> 1 -> squeeze(dim=2)
    N, C, T, H, W = 2, 3, 50, 16, 16
    x = jax.random.normal(ks[0], (N, C, T, H, W), jnp.float32)

    def kaiming_fan_in(k, shape):   # nn.init.kaiming_normal_(mode='fan_in', relu)
        fan_in = shape[1] * shape[2] * shape[3] * shape[4]
        return jax.random.normal(k, shape, jnp.float32) * jnp.sqrt(2.0 / fan_in)

    feat_dim = 512                  # resnet10t feature width
    std_cls = (2.0 / (feat_dim + num_classes)) ** 0.5
    bound = 1.0 / (feat_dim ** 0.5)

    params = {
        "w1": kaiming_fan_in(ks[1], (3, 3, 10, 1, 1)),
        "w2": kaiming_fan_in(ks[2], (3, 3, 5, 3, 3)),
        # Separate BatchNorm3d parameters per stage (inference-mode stats).
        "bn1_gamma": jnp.ones((3,), jnp.float32),
        "bn1_beta": jnp.zeros((3,), jnp.float32),
        "bn1_mean": jnp.zeros((3,), jnp.float32),
        "bn1_var": jnp.ones((3,), jnp.float32),
        "bn2_gamma": jnp.ones((3,), jnp.float32),
        "bn2_beta": jnp.zeros((3,), jnp.float32),
        "bn2_mean": jnp.zeros((3,), jnp.float32),
        "bn2_var": jnp.ones((3,), jnp.float32),
        # TODO(synk): surrogate for the pretrained resnet10t backbone.
        "w_bb": jax.random.normal(ks[3], (3, feat_dim), jnp.float32) * 0.02,
        "b_bb": jnp.zeros((feat_dim,), jnp.float32),
        # classifier: xavier_normal_ weight, default PyTorch Linear bias init.
        "w_cls": jax.random.normal(ks[4], (feat_dim, num_classes), jnp.float32) * std_cls,
        "b_cls": jax.random.uniform(ks[5], (num_classes,), jnp.float32, -bound, bound),
    }

    prep = prepare_params(params, T=T, H=H, W=W, num_classes=num_classes)
    out = conv_embeding_v3_forward(x, prep)
    out = jax.block_until_ready(out)

    assert out.shape == (N, num_classes), out.shape
    assert out.dtype == jnp.float32
    assert bool(jnp.all(jnp.isfinite(out)))
    print("KERNEL_OK")
</pallas_src>

<mosaic_0001>
module attributes {stable_mosaic.version = 11 : i64} {
  func.func @_fused_kernel(%arg0: i32, %arg1: memref<1x150x512xf32, #tpu.memory_space<vmem>>, %arg2: memref<15x150xf32, #tpu.memory_space<vmem>>, %arg3: memref<15x1xf32, #tpu.memory_space<vmem>>, %arg4: memref<1x512xf32, #tpu.memory_space<vmem>>, %arg5: memref<9x3x15xf32, #tpu.memory_space<vmem>>, %arg6: memref<3x1xf32, #tpu.memory_space<vmem>>, %arg7: memref<1x384xf32, #tpu.memory_space<vmem>>, %arg8: memref<3x10xf32, #tpu.memory_space<vmem>>, %arg9: memref<1x10xf32, #tpu.memory_space<vmem>>, %arg10: memref<1x1x10xf32, #tpu.memory_space<vmem>>, %arg11: memref<15x512xf32, #tpu.memory_space<vmem>>) attributes {dimension_semantics = [#tpu.dimension_semantics<parallel>], iteration_bounds = array<i64: 2>, scalar_prefetch = 0 : i64, scratch_operands = 1 : i64, tpu.core_type = #tpu.core_type<tc>, window_params = [{transform_indices = @transform_0, window_bounds = array<i64: 1, 150, 512>}, {pipeline_mode = #tpu.pipeline_mode<synchronous>, transform_indices = @transform_1, window_bounds = array<i64: 15, 150>}, {pipeline_mode = #tpu.pipeline_mode<synchronous>, transform_indices = @transform_2, window_bounds = array<i64: 15, 1>}, {pipeline_mode = #tpu.pipeline_mode<synchronous>, transform_indices = @transform_3, window_bounds = array<i64: 1, 512>}, {pipeline_mode = #tpu.pipeline_mode<synchronous>, transform_indices = @transform_4, window_bounds = array<i64: 9, 3, 15>}, {pipeline_mode = #tpu.pipeline_mode<synchronous>, transform_indices = @transform_5, window_bounds = array<i64: 3, 1>}, {pipeline_mode = #tpu.pipeline_mode<synchronous>, transform_indices = @transform_6, window_bounds = array<i64: 1, 384>}, {pipeline_mode = #tpu.pipeline_mode<synchronous>, transform_indices = @transform_7, window_bounds = array<i64: 3, 10>}, {pipeline_mode = #tpu.pipeline_mode<synchronous>, transform_indices = @transform_8, window_bounds = array<i64: 1, 10>}, {transform_indices = @transform_9, window_bounds = array<i64: 1, 1, 10>}]} {
    %c0 = arith.constant 0 : index
    %c0_0 = arith.constant 0 : index
    %0 = vector.load %arg2[%c0, %c0_0] : memref<15x150xf32, #tpu.memory_space<vmem>>, vector<15x150xf32>
    %c0_1 = arith.constant 0 : index
    %c0_2 = arith.constant 0 : index
    %c0_3 = arith.constant 0 : index
    %1 = vector.load %arg1[%c0_1, %c0_2, %c0_3] : memref<1x150x512xf32, #tpu.memory_space<vmem>>, vector<1x150x512xf32>
    %2 = vector.shape_cast %1 : vector<1x150x512xf32> to vector<150x512xf32>
    %cst = arith.constant dense<0.000000e+00> : vector<15x512xf32>
    %3 = tpu.matmul %0, %2, %cst {dimension_numbers = #tpu.dot_dimension_numbers<[1], [0], [0], [1], [0, 0, 1, 1], [], []>} : vector<15x150xf32>, vector<150x512xf32>, vector<15x512xf32> -> vector<15x512xf32>
    %c0_4 = arith.constant 0 : index
    %c0_5 = arith.constant 0 : index
    %4 = vector.load %arg4[%c0_4, %c0_5] : memref<1x512xf32, #tpu.memory_space<vmem>>, vector<1x512xf32>
    %c0_6 = arith.constant 0 : index
    %c0_7 = arith.constant 0 : index
    %5 = vector.load %arg3[%c0_6, %c0_7] : memref<15x1xf32, #tpu.memory_space<vmem>>, vector<15x1xf32>
    %6 = vector.broadcast %5 : vector<15x1xf32> to vector<15x512xf32>
    %7 = arith.addf %3, %6 : vector<15x512xf32>
    %cst_8 = arith.constant 0.000000e+00 : f32
    %8 = vector.broadcast %cst_8 : f32 to vector<15x512xf32>
    %9 = arith.maximumf %7, %8 : vector<15x512xf32>
    %10 = vector.broadcast %4 : vector<1x512xf32> to vector<15x512xf32>
    %11 = arith.mulf %10, %9 : vector<15x512xf32>
    %c0_9 = arith.constant 0 : index
    %c0_10 = arith.constant 0 : index
    %12 = vector.load %arg11[%c0_9, %c0_10] : memref<15x512xf32, #tpu.memory_space<vmem>>, vector<15x512xf32>
    tpu.vector_store %arg11[%c0_9, %c0_10], %11 {strides = array<i32>} : memref<15x512xf32, #tpu.memory_space<vmem>>, vector<15x512xf32>,
    %cst_11 = arith.constant 0.000000e+00 : f32
    %13 = vector.broadcast %cst_11 : f32 to vector<3x384xf32>
    %c0_12 = arith.constant 0 : index
    %c0_13 = arith.constant 0 : index
    %c0_14 = arith.constant 0 : index
    %14 = vector.load %arg5[%c0_12, %c0_13, %c0_14] : memref<9x3x15xf32, #tpu.memory_space<vmem>>, vector<1x3x15xf32>
    %15 = vector.shape_cast %14 : vector<1x3x15xf32> to vector<3x15xf32>
    %c0_15 = arith.constant 0 : index
    %c0_16 = arith.constant 0 : index
    %16 = vector.load %arg11[%c0_15, %c0_16] : memref<15x512xf32, #tpu.memory_space<vmem>>, vector<15x384xf32>
    %cst_17 = arith.constant dense<0.000000e+00> : vector<3x384xf32>
    %17 = tpu.matmul %15, %16, %cst_17 {dimension_numbers = #tpu.dot_dimension_numbers<[1], [0], [0], [1], [0, 0, 1, 1], [], []>} : vector<3x15xf32>, vector<15x384xf32>, vector<3x384xf32> -> vector<3x384xf32>
    %18 = arith.addf %13, %17 : vector<3x384xf32>
    %c1 = arith.constant 1 : index
    %c0_18 = arith.constant 0 : index
    %c0_19 = arith.constant 0 : index
    %19 = vector.load %arg5[%c1, %c0_18, %c0_19] : memref<9x3x15xf32, #tpu.memory_space<vmem>>, vector<1x3x15xf32>
    %20 = vector.shape_cast %19 : vector<1x3x15xf32> to vector<3x15xf32>
    %c0_20 = arith.constant 0 : index
    %c1_21 = arith.constant 1 : index
    %21 = vector.load %arg11[%c0_20, %c1_21] : memref<15x512xf32, #tpu.memory_space<vmem>>, vector<15x384xf32>
    %cst_22 = arith.constant dense<0.000000e+00> : vector<3x384xf32>
    %22 = tpu.matmul %20, %21, %cst_22 {dimension_numbers = #tpu.dot_dimension_numbers<[1], [0], [0], [1], [0, 0, 1, 1], [], []>} : vector<3x15xf32>, vector<15x384xf32>, vector<3x384xf32> -> vector<3x384xf32>
    %23 = arith.addf %18, %22 : vector<3x384xf32>
    %c2 = arith.constant 2 : index
    %c0_23 = arith.constant 0 : index
    %c0_24 = arith.constant 0 : index
    %24 = vector.load %arg5[%c2, %c0_23, %c0_24] : memref<9x3x15xf32, #tpu.memory_space<vmem>>, vector<1x3x15xf32>
    %25 = vector.shape_cast %24 : vector<1x3x15xf32> to vector<3x15xf32>
    %c0_25 = arith.constant 0 : index
    %c2_26 = arith.constant 2 : index
    %26 = vector.load %arg11[%c0_25, %c2_26] : memref<15x512xf32, #tpu.memory_space<vmem>>, vector<15x384xf32>
    %cst_27 = arith.constant dense<0.000000e+00> : vector<3x384xf32>
    %27 = tpu.matmul %25, %26, %cst_27 {dimension_numbers = #tpu.dot_dimension_numbers<[1], [0], [0], [1], [0, 0, 1, 1], [], []>} : vector<3x15xf32>, vector<15x384xf32>, vector<3x384xf32> -> vector<3x384xf32>
    %28 = arith.addf %23, %27 : vector<3x384xf32>
    %c3 = arith.constant 3 : index
    %c0_28 = arith.constant 0 : index
    %c0_29 = arith.constant 0 : index
    %29 = vector.load %arg5[%c3, %c0_28, %c0_29] : memref<9x3x15xf32, #tpu.memory_space<vmem>>, vector<1x3x15xf32>
    %30 = vector.shape_cast %29 : vector<1x3x15xf32> to vector<3x15xf32>
    %c0_30 = arith.constant 0 : index
    %c20 = arith.constant 20 : index
    %31 = vector.load %arg11[%c0_30, %c20] : memref<15x512xf32, #tpu.memory_space<vmem>>, vector<15x384xf32>
    %cst_31 = arith.constant dense<0.000000e+00> : vector<3x384xf32>
    %32 = tpu.matmul %30, %31, %cst_31 {dimension_numbers = #tpu.dot_dimension_numbers<[1], [0], [0], [1], [0, 0, 1, 1], [], []>} : vector<3x15xf32>, vector<15x384xf32>, vector<3x384xf32> -> vector<3x384xf32>
    %33 = arith.addf %28, %32 : vector<3x384xf32>
    %c4 = arith.constant 4 : index
    %c0_32 = arith.constant 0 : index
    %c0_33 = arith.constant 0 : index
    %34 = vector.load %arg5[%c4, %c0_32, %c0_33] : memref<9x3x15xf32, #tpu.memory_space<vmem>>, vector<1x3x15xf32>
    %35 = vector.shape_cast %34 : vector<1x3x15xf32> to vector<3x15xf32>
    %c0_34 = arith.constant 0 : index
    %c21 = arith.constant 21 : index
    %36 = vector.load %arg11[%c0_34, %c21] : memref<15x512xf32, #tpu.memory_space<vmem>>, vector<15x384xf32>
    %cst_35 = arith.constant dense<0.000000e+00> : vector<3x384xf32>
    %37 = tpu.matmul %35, %36, %cst_35 {dimension_numbers = #tpu.dot_dimension_numbers<[1], [0], [0], [1], [0, 0, 1, 1], [], []>} : vector<3x15xf32>, vector<15x384xf32>, vector<3x384xf32> -> vector<3x384xf32>
    %38 = arith.addf %33, %37 : vector<3x384xf32>
    %c5 = arith.constant 5 : index
    %c0_36 = arith.constant 0 : index
    %c0_37 = arith.constant 0 : index
    %39 = vector.load %arg5[%c5, %c0_36, %c0_37] : memref<9x3x15xf32, #tpu.memory_space<vmem>>, vector<1x3x15xf32>
    %40 = vector.shape_cast %39 : vector<1x3x15xf32> to vector<3x15xf32>
    %c0_38 = arith.constant 0 : index
    %c22 = arith.constant 22 : index
    %41 = vector.load %arg11[%c0_38, %c22] : memref<15x512xf32, #tpu.memory_space<vmem>>, vector<15x384xf32>
    %cst_39 = arith.constant dense<0.000000e+00> : vector<3x384xf32>
    %42 = tpu.matmul %40, %41, %cst_39 {dimension_numbers = #tpu.dot_dimension_numbers<[1], [0], [0], [1], [0, 0, 1, 1], [], []>} : vector<3x15xf32>, vector<15x384xf32>, vector<3x384xf32> -> vector<3x384xf32>
    %43 = arith.addf %38, %42 : vector<3x384xf32>
    %c6 = arith.constant 6 : index
    %c0_40 = arith.constant 0 : index
    %c0_41 = arith.constant 0 : index
    %44 = vector.load %arg5[%c6, %c0_40, %c0_41] : memref<9x3x15xf32, #tpu.memory_space<vmem>>, vector<1x3x15xf32>
    %45 = vector.shape_cast %44 : vector<1x3x15xf32> to vector<3x15xf32>
    %c0_42 = arith.constant 0 : index
    %c40 = arith.constant 40 : index
    %46 = vector.load %arg11[%c0_42, %c40] : memref<15x512xf32, #tpu.memory_space<vmem>>, vector<15x384xf32>
    %cst_43 = arith.constant dense<0.000000e+00> : vector<3x384xf32>
    %47 = tpu.matmul %45, %46, %cst_43 {dimension_numbers = #tpu.dot_dimension_numbers<[1], [0], [0], [1], [0, 0, 1, 1], [], []>} : vector<3x15xf32>, vector<15x384xf32>, vector<3x384xf32> -> vector<3x384xf32>
    %48 = arith.addf %43, %47 : vector<3x384xf32>
    %c7 = arith.constant 7 : index
    %c0_44 = arith.constant 0 : index
    %c0_45 = arith.constant 0 : index
    %49 = vector.load %arg5[%c7, %c0_44, %c0_45] : memref<9x3x15xf32, #tpu.memory_space<vmem>>, vector<1x3x15xf32>
    %50 = vector.shape_cast %49 : vector<1x3x15xf32> to vector<3x15xf32>
    %c0_46 = arith.constant 0 : index
    %c41 = arith.constant 41 : index
    %51 = vector.load %arg11[%c0_46, %c41] : memref<15x512xf32, #tpu.memory_space<vmem>>, vector<15x384xf32>
    %cst_47 = arith.constant dense<0.000000e+00> : vector<3x384xf32>
    %52 = tpu.matmul %50, %51, %cst_47 {dimension_numbers = #tpu.dot_dimension_numbers<[1], [0], [0], [1], [0, 0, 1, 1], [], []>} : vector<3x15xf32>, vector<15x384xf32>, vector<3x384xf32> -> vector<3x384xf32>
    %53 = arith.addf %48, %52 : vector<3x384xf32>
    %c8 = arith.constant 8 : index
    %c0_48 = arith.constant 0 : index
    %c0_49 = arith.constant 0 : index
    %54 = vector.load %arg5[%c8, %c0_48, %c0_49] : memref<9x3x15xf32, #tpu.memory_space<vmem>>, vector<1x3x15xf32>
    %55 = vector.shape_cast %54 : vector<1x3x15xf32> to vector<3x15xf32>
    %c0_50 = arith.constant 0 : index
    %c42 = arith.constant 42 : index
    %56 = vector.load %arg11[%c0_50, %c42] : memref<15x512xf32, #tpu.memory_space<vmem>>, vector<15x384xf32>
    %cst_51 = arith.constant dense<0.000000e+00> : vector<3x384xf32>
    %57 = tpu.matmul %55, %56, %cst_51 {dimension_numbers = #tpu.dot_dimension_numbers<[1], [0], [0], [1], [0, 0, 1, 1], [], []>} : vector<3x15xf32>, vector<15x384xf32>, vector<3x384xf32> -> vector<3x384xf32>
    %58 = arith.addf %53, %57 : vector<3x384xf32>
    %c0_52 = arith.constant 0 : index
    %c0_53 = arith.constant 0 : index
    %59 = vector.load %arg7[%c0_52, %c0_53] : memref<1x384xf32, #tpu.memory_space<vmem>>, vector<1x384xf32>
    %c0_54 = arith.constant 0 : index
    %c0_55 = arith.constant 0 : index
    %60 = vector.load %arg6[%c0_54, %c0_55] : memref<3x1xf32, #tpu.memory_space<vmem>>, vector<3x1xf32>
    %61 = vector.broadcast %60 : vector<3x1xf32> to vector<3x384xf32>
    %62 = arith.addf %58, %61 : vector<3x384xf32>
    %cst_56 = arith.constant 0.000000e+00 : f32
    %63 = vector.broadcast %cst_56 : f32 to vector<3x384xf32>
    %64 = arith.maximumf %62, %63 : vector<3x384xf32>
    %65 = vector.broadcast %59 : vector<1x384xf32> to vector<3x384xf32>
    %66 = arith.mulf %65, %64 : vector<3x384xf32>
    %cst_57 = arith.constant dense<0.000000e+00> : vector<3xf32>
    %67 = vector.multi_reduction <add>, %66, %cst_57 [1] : vector<3x384xf32> to vector<3xf32>
    %68 = vector.shape_cast %67 : vector<3xf32> to vector<3x1xf32>
    %c0_58 = arith.constant 0 : index
    %c0_59 = arith.constant 0 : index
    %69 = vector.load %arg8[%c0_58, %c0_59] : memref<3x10xf32, #tpu.memory_space<vmem>>, vector<3x10xf32>
    %70 = vector.broadcast %68 : vector<3x1xf32> to vector<3x10xf32>
    %71 = arith.mulf %70, %69 : vector<3x10xf32>
    %cst_60 = arith.constant dense<0.000000e+00> : vector<10xf32>
    %72 = vector.multi_reduction <add>, %71, %cst_60 [0] : vector<3x10xf32> to vector<10xf32>
    %73 = vector.shape_cast %72 : vector<10xf32> to vector<1x10xf32>
    %c0_61 = arith.constant 0 : index
    %c0_62 = arith.constant 0 : index
    %74 = vector.load %arg9[%c0_61, %c0_62] : memref<1x10xf32, #tpu.memory_space<vmem>>, vector<1x10xf32>
    %75 = arith.addf %73, %74 : vector<1x10xf32>
    %c0_63 = arith.constant 0 : index
    %c0_64 = arith.constant 0 : index
    %c0_65 = arith.constant 0 : index
    %76 = vector.load %arg10[%c0_63, %c0_64, %c0_65] : memref<1x1x10xf32, #tpu.memory_space<vmem>>, vector<1x1x10xf32>
    %77 = vector.shape_cast %76 : vector<1x1x10xf32> to vector<1x10xf32>
    %78 = vector.shape_cast %75 : vector<1x10xf32> to vector<1x1x10xf32>
    tpu.vector_store %arg10[%c0_63, %c0_64, %c0_65], %78 {strides = array<i32>} : memref<1x1x10xf32, #tpu.memory_space<vmem>>, vector<1x1x10xf32>,
    return
  }
  func.func @transform_0(%arg0: i32) -> (i32, i32, i32) {
    %c0_i32 = arith.constant 0 : i32
    %c0_i32_0 = arith.constant 0 : i32
    %c0_i32_1 = arith.constant 0 : i32
    return %arg0, %c0_i32, %c0_i32_0 : i32, i32, i32
  }
  func.func @transform_1(%arg0: i32) -> (i32, i32) {
    %c0_i32 = arith.constant 0 : i32
    %c0_i32_0 = arith.constant 0 : i32
    %c0_i32_1 = arith.constant 0 : i32
    return %c0_i32, %c0_i32_0 : i32, i32
  }
  func.func @transform_2(%arg0: i32) -> (i32, i32) {
    %c0_i32 = arith.constant 0 : i32
    %c0_i32_0 = arith.constant 0 : i32
    %c0_i32_1 = arith.constant 0 : i32
    return %c0_i32, %c0_i32_0 : i32, i32
  }
  func.func @transform_3(%arg0: i32) -> (i32, i32) {
    %c0_i32 = arith.constant 0 : i32
    %c0_i32_0 = arith.constant 0 : i32
    %c0_i32_1 = arith.constant 0 : i32
    return %c0_i32, %c0_i32_0 : i32, i32
  }
  func.func @transform_4(%arg0: i32) -> (i32, i32, i32) {
    %c0_i32 = arith.constant 0 : i32
    %c0_i32_0 = arith.constant 0 : i32
    %c0_i32_1 = arith.constant 0 : i32
    %c0_i32_2 = arith.constant 0 : i32
    return %c0_i32, %c0_i32_0, %c0_i32_1 : i32, i32, i32
  }
  func.func @transform_5(%arg0: i32) -> (i32, i32) {
    %c0_i32 = arith.constant 0 : i32
    %c0_i32_0 = arith.constant 0 : i32
    %c0_i32_1 = arith.constant 0 : i32
    return %c0_i32, %c0_i32_0 : i32, i32
  }
  func.func @transform_6(%arg0: i32) -> (i32, i32) {
    %c0_i32 = arith.constant 0 : i32
    %c0_i32_0 = arith.constant 0 : i32
    %c0_i32_1 = arith.constant 0 : i32
    return %c0_i32, %c0_i32_0 : i32, i32
  }
  func.func @transform_7(%arg0: i32) -> (i32, i32) {
    %c0_i32 = arith.constant 0 : i32
    %c0_i32_0 = arith.constant 0 : i32
    %c0_i32_1 = arith.constant 0 : i32
    return %c0_i32, %c0_i32_0 : i32, i32
  }
  func.func @transform_8(%arg0: i32) -> (i32, i32) {
    %c0_i32 = arith.constant 0 : i32
    %c0_i32_0 = arith.constant 0 : i32
    %c0_i32_1 = arith.constant 0 : i32
    return %c0_i32, %c0_i32_0 : i32, i32
  }
  func.func @transform_9(%arg0: i32) -> (i32, i32, i32) {
    %c0_i32 = arith.constant 0 : i32
    %c0_i32_0 = arith.constant 0 : i32
    %c0_i32_1 = arith.constant 0 : i32
    return %arg0, %c0_i32, %c0_i32_0 : i32, i32, i32
  }
}

</mosaic_0001>

<llo_original>
// kernel: tpu_custom_call.1
$region0: #{tpu_custom_call.1}
  #allocation0 [shape = 'u32[]', space=smem, size = 0x4, offset = 0x4, fixed_abs, tag = 'smem constant byte address 0x4 - core index']
  #allocation1 [shape = 'u32[144,128]{1,0:T(1,128)}', space=vmem, size = 0x12000, scoped, tag = 'internal scratch']
  #allocation2 [shape = 'f32[15,512]{1,0:T(8,128)}', space=vmem, size = 0x8000, scoped, tag = 'scratch operand']
  %s0 = inlined_call_operand.vmem [shape: f32[2,150,512], index: 0, kind: input, shape index: {}]
  %s1 = inlined_call_operand.vmem [shape: f32[15,150], index: 1, kind: input, shape index: {}]
  %s2 = inlined_call_operand.vmem [shape: f32[15,1], index: 2, kind: input, shape index: {}]
  %s3 = inlined_call_operand.vmem [shape: f32[1,512], index: 3, kind: input, shape index: {}]
  %s4 = inlined_call_operand.vmem [shape: f32[9,3,15], index: 4, kind: input, shape index: {}]
  %s5 = inlined_call_operand.vmem [shape: f32[3,1], index: 5, kind: input, shape index: {}]
  %s6 = inlined_call_operand.vmem [shape: f32[1,384], index: 6, kind: input, shape index: {}]
  %s7 = inlined_call_operand.vmem [shape: f32[3,10], index: 7, kind: input, shape index: {}]
  %s8 = inlined_call_operand.vmem [shape: f32[1,10], index: 8, kind: input, shape index: {}]
  %s9 = inlined_call_operand.hbm [shape: f32[2,1,10], index: 9, kind: output, shape index: {}]
  %s10 = sld [smem:[#allocation0]]
  $region69: #{tpu_custom_call.1} parent=0
    _
  %s12 = ssub.s32 1, %s10
  %s13 = scalar_select 0, %s12, %s10
  $region1: #{tpu_custom_call.1} parent=0
    #allocation3 [shape = 'u8[1024]{0}', space=vmem, size = 0x400, scoped, tag = 'output window, operand 0']
    #allocation4 [shape = 's32[2]{0}', space=sflag, size = 0x8, scoped, tag = 'scoped memory for tpu_custom_call.1']
    %14 = vsyncpa [#allocation4], 0
    %s15 = scalar_lea.sflag [#allocation4], 1
    %16 = vsyncpa %s15, 0
    loop: start=0, step=1, limit=4
    $region2: #{tpu_custom_call.1} parent=1 // loop_pre_header
      _
    $region3: #{tpu_custom_call.1} parent=1 // loop_header
      %s18 = sphi 0, %s22
      %p19 = scmp.ge.s32.totalorder %s18, 4
      %s28 = sphi 0, %s30
      %s31 = sphi 0, %s28
      %s32 = sphi 0, %s31
      %s48 = sphi 0, %s32
      %s52 = sphi 0, %s52
      %s54 = sphi 0, %s52
      %s55 = sphi 0, %s54
      %s69 = sphi 0, %s55
      %s73 = sphi 0, %s73
      %s75 = sphi 0, %s73
      %s76 = sphi 0, %s75
      %s90 = sphi 0, %s76
      %s94 = sphi 0, %s94
      %s96 = sphi 0, %s94
      %s97 = sphi 0, %s96
      %s111 = sphi 0, %s97
      %s115 = sphi 0, %s115
      %s117 = sphi 0, %s115
      %s118 = sphi 0, %s117
      %s132 = sphi 0, %s118
      %s136 = sphi 0, %s136
      %s138 = sphi 0, %s136
      %s139 = sphi 0, %s138
      %s153 = sphi 0, %s139
      %s157 = sphi 0, %s157
      %s159 = sphi 0, %s157
      %s160 = sphi 0, %s159
      %s174 = sphi 0, %s160
      %s178 = sphi 0, %s178
      %s180 = sphi 0, %s178
      %s181 = sphi 0, %s180
      %s195 = sphi 0, %s181
      %s199 = sphi 0, %s199
      %s201 = sphi 0, %s199
      %s202 = sphi 0, %s201
      %s216 = sphi 0, %s202
      %s222 = sphi 0, %s224
      %s225 = sphi 0, %s222
      %s226 = sphi 0, %s225
      %s242 = sphi 0, %s226
    $region4: #{tpu_custom_call.1} parent=1 // loop_header_branch
      %21 = sbr.rel (%p19) target = $region8
    $region5: #{tpu_custom_call.1} parent=1 // loop_body
      %s23 = ssub.s32 %s18, 1
      %s24 = ssub.s32 %s18, 2
      %s25 = sadd.s32 %s18, 1
      %s26 = ssub.s32 %s18, %s25
      %p27 = scmp.eq.s32.totalorder %s26, 0
      %s29 = sadd.s32 %s28, 1
      %s30 = scalar_select %p27, %s28, %s29
      %p33 = pneg %p27
      %p34 = scmp.eq.s32.totalorder %s18, 1
      %p35 = por %p33, %p34
      %p36 = scmp.ne.s32.totalorder %s28, %s31
      %p37 = scmp.eq.s32.totalorder %s18, 0
      %p38 = por %p36, %p37
      %p39 = scmp.ne.s32.totalorder %s28, %s31
      %p40 = scmp.eq.s32.totalorder %s23, 1
      %p41 = por %p39, %p40
      %p42 = scmp.ne.s32.totalorder %s31, %s32
      %p43 = scmp.eq.s32.totalorder %s23, 0
      %p44 = por %p42, %p43
      %p45 = scmp.ne.s32.totalorder %s31, %s32
      %p46 = scmp.eq.s32.totalorder %s24, 1
      %p47 = por %p45, %p46
      %p49 = scmp.ne.s32.totalorder %s32, %s48
      %p50 = scmp.eq.s32.totalorder %s24, 0
      %p51 = por %p49, %p50
      %s53 = sadd.s32 %s52, 1
      %p56 = scmp.eq.s32.totalorder %s18, 1
      %p57 = scmp.ne.s32.totalorder %s52, %s54
      %p58 = scmp.eq.s32.totalorder %s18, 0
      %p59 = por %p57, %p58
      %p60 = scmp.ne.s32.totalorder %s52, %s54
      %p61 = scmp.eq.s32.totalorder %s23, 1
      %p62 = por %p60, %p61
      %p63 = scmp.ne.s32.totalorder %s54, %s55
      %p64 = scmp.eq.s32.totalorder %s23, 0
      %p65 = por %p63, %p64
      %p66 = scmp.ne.s32.totalorder %s54, %s55
      %p67 = scmp.eq.s32.totalorder %s24, 1
      %p68 = por %p66, %p67
      %p70 = scmp.ne.s32.totalorder %s55, %s69
      %p71 = scmp.eq.s32.totalorder %s24, 0
      %p72 = por %p70, %p71
      %s74 = sadd.s32 %s73, 1
      %p77 = scmp.eq.s32.totalorder %s18, 1
      %p78 = scmp.ne.s32.totalorder %s73, %s75
      %p79 = scmp.eq.s32.totalorder %s18, 0
      %p80 = por %p78, %p79
      %p81 = scmp.ne.s32.totalorder %s73, %s75
      %p82 = scmp.eq.s32.totalorder %s23, 1
      %p83 = por %p81, %p82
      %p84 = scmp.ne.s32.totalorder %s75, %s76
      %p85 = scmp.eq.s32.totalorder %s23, 0
      %p86 = por %p84, %p85
      %p87 = scmp.ne.s32.totalorder %s75, %s76
      %p88 = scmp.eq.s32.totalorder %s24, 1
      %p89 = por %p87, %p88
      %p91 = scmp.ne.s32.totalorder %s76, %s90
      %p92 = scmp.eq.s32.totalorder %s24, 0
      %p93 = por %p91, %p92
      %s95 = sadd.s32 %s94, 1
      %p98 = scmp.eq.s32.totalorder %s18, 1
      %p99 = scmp.ne.s32.totalorder %s94, %s96
      %p100 = scmp.eq.s32.totalorder %s18, 0
      %p101 = por %p99, %p100
      %p102 = scmp.ne.s32.totalorder %s94, %s96
      %p103 = scmp.eq.s32.totalorder %s23, 1
      %p104 = por %p102, %p103
      %p105 = scmp.ne.s32.totalorder %s96, %s97
      %p106 = scmp.eq.s32.totalorder %s23, 0
      %p107 = por %p105, %p106
      %p108 = scmp.ne.s32.totalorder %s96, %s97
      %p109 = scmp.eq.s32.totalorder %s24, 1
      %p110 = por %p108, %p109
      %p112 = scmp.ne.s32.totalorder %s97, %s111
      %p113 = scmp.eq.s32.totalorder %s24, 0
      %p114 = por %p112, %p113
      %s116 = sadd.s32 %s115, 1
      %p119 = scmp.eq.s32.totalorder %s18, 1
      %p120 = scmp.ne.s32.totalorder %s115, %s117
      %p121 = scmp.eq.s32.totalorder %s18, 0
      %p122 = por %p120, %p121
      %p123 = scmp.ne.s32.totalorder %s115, %s117
      %p124 = scmp.eq.s32.totalorder %s23, 1
      %p125 = por %p123, %p124
      %p126 = scmp.ne.s32.totalorder %s117, %s118
      %p127 = scmp.eq.s32.totalorder %s23, 0
      %p128 = por %p126, %p127
      %p129 = scmp.ne.s32.totalorder %s117, %s118
      %p130 = scmp.eq.s32.totalorder %s24, 1
      %p131 = por %p129, %p130
      %p133 = scmp.ne.s32.totalorder %s118, %s132
      %p134 = scmp.eq.s32.totalorder %s24, 0
      %p135 = por %p133, %p134
      %s137 = sadd.s32 %s136, 1
      %p140 = scmp.eq.s32.totalorder %s18, 1
      %p141 = scmp.ne.s32.totalorder %s136, %s138
      %p142 = scmp.eq.s32.totalorder %s18, 0
      %p143 = por %p141, %p142
      %p144 = scmp.ne.s32.totalorder %s136, %s138
      %p145 = scmp.eq.s32.totalorder %s23, 1
      %p146 = por %p144, %p145
      %p147 = scmp.ne.s32.totalorder %s138, %s139
      %p148 = scmp.eq.s32.totalorder %s23, 0
      %p149 = por %p147, %p148
      %p150 = scmp.ne.s32.totalorder %s138, %s139
      %p151 = scmp.eq.s32.totalorder %s24, 1
      %p152 = por %p150, %p151
      %p154 = scmp.ne.s32.totalorder %s139, %s153
      %p155 = scmp.eq.s32.totalorder %s24, 0
      %p156 = por %p154, %p155
      %s158 = sadd.s32 %s157, 1
      %p161 = scmp.eq.s32.totalorder %s18, 1
      %p162 = scmp.ne.s32.totalorder %s157, %s159
      %p163 = scmp.eq.s32.totalorder %s18, 0
      %p164 = por %p162, %p163
      %p165 = scmp.ne.s32.totalorder %s157, %s159
      %p166 = scmp.eq.s32.totalorder %s23, 1
      %p167 = por %p165, %p166
      %p168 = scmp.ne.s32.totalorder %s159, %s160
      %p169 = scmp.eq.s32.totalorder %s23, 0
      %p170 = por %p168, %p169
      %p171 = scmp.ne.s32.totalorder %s159, %s160
      %p172 = scmp.eq.s32.totalorder %s24, 1
      %p173 = por %p171, %p172
      %p175 = scmp.ne.s32.totalorder %s160, %s174
      %p176 = scmp.eq.s32.totalorder %s24, 0
      %p177 = por %p175, %p176
      %s179 = sadd.s32 %s178, 1
      %p182 = scmp.eq.s32.totalorder %s18, 1
      %p183 = scmp.ne.s32.totalorder %s178, %s180
      %p184 = scmp.eq.s32.totalorder %s18, 0
      %p185 = por %p183, %p184
      %p186 = scmp.ne.s32.totalorder %s178, %s180
      %p187 = scmp.eq.s32.totalorder %s23, 1
      %p188 = por %p186, %p187
      %p189 = scmp.ne.s32.totalorder %s180, %s181
      %p190 = scmp.eq.s32.totalorder %s23, 0
      %p191 = por %p189, %p190
      %p192 = scmp.ne.s32.totalorder %s180, %s181
      %p193 = scmp.eq.s32.totalorder %s24, 1
      %p194 = por %p192, %p193
      %p196 = scmp.ne.s32.totalorder %s181, %s195
      %p197 = scmp.eq.s32.totalorder %s24, 0
      %p198 = por %p196, %p197
      %s200 = sadd.s32 %s199, 1
      %p203 = scmp.eq.s32.totalorder %s18, 1
      %p204 = scmp.ne.s32.totalorder %s199, %s201
      %p205 = scmp.eq.s32.totalorder %s18, 0
      %p206 = por %p204, %p205
      %p207 = scmp.ne.s32.totalorder %s199, %s201
      %p208 = scmp.eq.s32.totalorder %s23, 1
      %p209 = por %p207, %p208
      %p210 = scmp.ne.s32.totalorder %s201, %s202
      %p211 = scmp.eq.s32.totalorder %s23, 0
      %p212 = por %p210, %p211
      %p213 = scmp.ne.s32.totalorder %s201, %s202
      %p214 = scmp.eq.s32.totalorder %s24, 1
      %p215 = por %p213, %p214
      %p217 = scmp.ne.s32.totalorder %s202, %s216
      %p218 = scmp.eq.s32.totalorder %s24, 0
      %p219 = por %p217, %p218
      %s220 = ssub.s32 %s18, %s25
      %p221 = scmp.eq.s32.totalorder %s220, 0
      %s223 = sadd.s32 %s222, 1
      %s224 = scalar_select %p221, %s222, %s223
      %p227 = pneg %p221
      %p228 = scmp.eq.s32.totalorder %s18, 1
      %p229 = por %p227, %p228
      %p230 = scmp.ne.s32.totalorder %s222, %s225
      %p231 = scmp.eq.s32.totalorder %s18, 0
      %p232 = por %p230, %p231
      %p233 = scmp.ne.s32.totalorder %s222, %s225
      %p234 = scmp.eq.s32.totalorder %s23, 1
      %p235 = por %p233, %p234
      %p236 = scmp.ne.s32.totalorder %s225, %s226
      %p237 = scmp.eq.s32.totalorder %s23, 0
      %p238 = por %p236, %p237
      %p239 = scmp.ne.s32.totalorder %s225, %s226
      %p240 = scmp.eq.s32.totalorder %s24, 1
      %p241 = por %p239, %p240
      %p243 = scmp.ne.s32.totalorder %s226, %s242
      %p244 = scmp.eq.s32.totalorder %s24, 0
      %p245 = por %p243, %p244
      %p246 = scmp.le.s32.totalorder 1, %s18
      %p247 = scmp.lt.s32.totalorder %s18, 3
      %p248 = pnand %p246, %p247
      %p249 = pneg %p248
      // Predicated region
      $region9: #{tpu_custom_call.1} parent=5 // pred_check
        _
      $region10: #{tpu_custom_call.1} parent=5 // pred_check_branch
        %251 = sbr.rel (%p248) target = $region12
      $region11: #{tpu_custom_call.1} parent=5 // pred_region
        %s252 = ssub.s32 %s18, 1
        // Predicated region
        $region13: #{tpu_custom_call.1} parent=11 // pred_check
          %p253 = pneg %p65
        $region14: #{tpu_custom_call.1} parent=11 // pred_check_branch
          %255 = sbr.rel (%p253) target = $region16
        $region15: #{tpu_custom_call.1} parent=11 // pred_region
          _
        $region16: #{tpu_custom_call.1} parent=11 // pred_fallthru
          _
        // Predicated region
        $region17: #{tpu_custom_call.1} parent=11 // pred_check
          %p256 = pneg %p86
        $region18: #{tpu_custom_call.1} parent=11 // pred_check_branch
          %258 = sbr.rel (%p256) target = $region20
        $region19: #{tpu_custom_call.1} parent=11 // pred_region
          _
        $region20: #{tpu_custom_call.1} parent=11 // pred_fallthru
          _
        // Predicated region
        $region21: #{tpu_custom_call.1} parent=11 // pred_check
          %p259 = pneg %p107
        $region22: #{tpu_custom_call.1} parent=11 // pred_check_branch
          %261 = sbr.rel (%p259) target = $region24
        $region23: #{tpu_custom_call.1} parent=11 // pred_region
          _
        $region24: #{tpu_custom_call.1} parent=11 // pred_fallthru
          _
        // Predicated region
        $region25: #{tpu_custom_call.1} parent=11 // pred_check
          %p262 = pneg %p128
        $region26: #{tpu_custom_call.1} parent=11 // pred_check_branch
          %264 = sbr.rel (%p262) target = $region28
        $region27: #{tpu_custom_call.1} parent=11 // pred_region
          _
        $region28: #{tpu_custom_call.1} parent=11 // pred_fallthru
          _
        // Predicated region
        $region29: #{tpu_custom_call.1} parent=11 // pred_check
          %p265 = pneg %p149
        $region30: #{tpu_custom_call.1} parent=11 // pred_check_branch
          %267 = sbr.rel (%p265) target = $region32
        $region31: #{tpu_custom_call.1} parent=11 // pred_region
          _
        $region32: #{tpu_custom_call.1} parent=11 // pred_fallthru
          _
        // Predicated region
        $region33: #{tpu_custom_call.1} parent=11 // pred_check
          %p268 = pneg %p170
        $region34: #{tpu_custom_call.1} parent=11 // pred_check_branch
          %270 = sbr.rel (%p268) target = $region36
        $region35: #{tpu_custom_call.1} parent=11 // pred_region
          _
        $region36: #{tpu_custom_call.1} parent=11 // pred_fallthru
          _
        // Predicated region
        $region37: #{tpu_custom_call.1} parent=11 // pred_check
          %p271 = pneg %p191
        $region38: #{tpu_custom_call.1} parent=11 // pred_check_branch
          %273 = sbr.rel (%p271) target = $region40
        $region39: #{tpu_custom_call.1} parent=11 // pred_region
          _
        $region40: #{tpu_custom_call.1} parent=11 // pred_fallthru
          _
        // Predicated region
        $region41: #{tpu_custom_call.1} parent=11 // pred_check
          %p274 = pneg %p212
        $region42: #{tpu_custom_call.1} parent=11 // pred_check_branch
          %276 = sbr.rel (%p274) target = $region44
        $region43: #{tpu_custom_call.1} parent=11 // pred_region
          _
        $region44: #{tpu_custom_call.1} parent=11 // pred_fallthru
          _
      $region12: #{tpu_custom_call.1} parent=5 // pred_fallthru
        _
      %p277 = scmp.lt.s32.totalorder %s18, 2
      // Predicated region
      $region45: #{tpu_custom_call.1} parent=5 // pred_check
        %p278 = pneg %p277
      $region46: #{tpu_custom_call.1} parent=5 // pred_check_branch
        %280 = sbr.rel (%p278) target = $region48
      $region47: #{tpu_custom_call.1} parent=5 // pred_region
        // Predicated region
        $region49: #{tpu_custom_call.1} parent=47 // pred_check
          %p281 = pneg %p38
        $region50: #{tpu_custom_call.1} parent=47 // pred_check_branch
          %283 = sbr.rel (%p281) target = $region52
        $region51: #{tpu_custom_call.1} parent=47 // pred_region
          %p284 = scmp.lt.s32.totalorder %s18, 1
          %s285 = scalar_select %p284, %s18, 1
          %s286 = smul.addr %s285, 76
          %s287 = smul.addr %s286, 8
          %s288 = scalar_lea.vmem %s0, %s287
        $region52: #{tpu_custom_call.1} parent=47 // pred_fallthru
          _
      $region48: #{tpu_custom_call.1} parent=5 // pred_fallthru
        _
      %p289 = scmp.le.s32.totalorder 1, %s18
      %p290 = scmp.lt.s32.totalorder %s18, 3
      %p291 = pnand %p289, %p290
      %p292 = pneg %p291
      // Predicated region
      $region53: #{tpu_custom_call.1} parent=5 // pred_check
        _
      $region54: #{tpu_custom_call.1} parent=5 // pred_check_branch
        %294 = sbr.rel (%p291) target = $region56
      $region55: #{tpu_custom_call.1} parent=5 // pred_region
        %s295 = ssub.s32 %s18, 1
        %p296 = scmp.lt.s32.totalorder %s23, 1
        %s297 = scalar_select %p296, %s23, 1
        %s298 = smul.addr %s297, 76
        %s299 = smul.addr %s298, 8
        %s300 = scalar_lea.vmem %s0, %s299
        %p301 = pneg %p44
        %p302 = pneg %p41
        %p303 = pneg %p65
        %p304 = pneg %p62
        %p305 = pneg %p86
        %p306 = pneg %p83
        %p307 = pneg %p107
        %p308 = pneg %p104
        %p309 = pneg %p128
        %p310 = pneg %p125
        %p311 = pneg %p149
        %p312 = pneg %p146
        %p313 = pneg %p170
        %p314 = pneg %p167
        %p315 = pneg %p191
        %p316 = pneg %p188
        %p317 = pneg %p212
        %p318 = pneg %p209
        %p319 = pneg %p238
        %p320 = pneg %p235
        %s321 = sand.u32 %s225, 1
        %s322 = scalar_lea.sflag [#allocation4], %s321
        %s323 = sand.u32 %s225, 1
        %s324 = scalar_lea.vmem [#allocation3], %s323
        %p325 = scmp.lt.s32.totalorder %s23, 1
        %s326 = scalar_select %p325, %s23, 1
        %s327 = smul.addr %s326, 76
        %s328 = smul.addr %s327, 8
        %s329 = scalar_lea.vmem %s0, %s328
        %v330 = vld [vmem:[%s1] sm:$0xff]
        %v331 = vld [vmem:[%s1 + $0x8] sm:$0xff]
        %v332 = vld [vmem:[%s1 + $0x10] sm:$0x7f]
        %v333 = vld [vmem:[%s1 + $0x18] sm:$0x7f]
        %v334 = vld [vmem:[%s329] sm:$0xff]
        %v335 = vld [vmem:[%s329 + $0x8] sm:$0xff]
        %v336 = vld [vmem:[%s329 + $0x10] sm:$0xff]
        %v337 = vld [vmem:[%s329 + $0x18] sm:$0xff]
        %v338 = vld [vmem:[%s329 + $0x20] sm:$0xff]
        %v339 = vld [vmem:[%s329 + $0x28] sm:$0xff]
        %v340 = vld [vmem:[%s329 + $0x30] sm:$0xff]
        %v341 = vld [vmem:[%s329 + $0x38] sm:$0xff]
        %v342 = vld [vmem:[%s329 + $0x40] sm:$0xff]
        %v343 = vld [vmem:[%s329 + $0x48] sm:$0xff]
        %v344 = vld [vmem:[%s329 + $0x50] sm:$0xff]
        %v345 = vld [vmem:[%s329 + $0x58] sm:$0xff]
        %v346 = vld [vmem:[%s329 + $0x60] sm:$0xff]
        %v347 = vld [vmem:[%s329 + $0x68] sm:$0xff]
        %v348 = vld [vmem:[%s329 + $0x70] sm:$0xff]
        %v349 = vld [vmem:[%s329 + $0x78] sm:$0xff]
        %v350 = vld [vmem:[%s329 + $0x80] sm:$0xff]
        %v351 = vld [vmem:[%s329 + $0x88] sm:$0xff]
        %v352 = vld [vmem:[%s329 + $0x90] sm:$0xff]
        %v353 = vld [vmem:[%s329 + $0x98] sm:$0xff]
        %v354 = vld [vmem:[%s329 + $0xa0] sm:$0xff]
        %v355 = vld [vmem:[%s329 + $0xa8] sm:$0xff]
        %v356 = vld [vmem:[%s329 + $0xb0] sm:$0xff]
        %v357 = vld [vmem:[%s329 + $0xb8] sm:$0xff]
        %v358 = vld [vmem:[%s329 + $0xc0] sm:$0xff]
        %v359 = vld [vmem:[%s329 + $0xc8] sm:$0xff]
        %v360 = vld [vmem:[%s329 + $0xd0] sm:$0xff]
        %v361 = vld [vmem:[%s329 + $0xd8] sm:$0xff]
        %v362 = vld [vmem:[%s329 + $0xe0] sm:$0xff]
        %v363 = vld [vmem:[%s329 + $0xe8] sm:$0xff]
        %v364 = vld [vmem:[%s329 + $0xf0] sm:$0xff]
        %v365 = vld [vmem:[%s329 + $0xf8] sm:$0xff]
        %v366 = vld [vmem:[%s329 + $0x100] sm:$0xff]
        %v367 = vld [vmem:[%s329 + $0x108] sm:$0xff]
        %v368 = vld [vmem:[%s329 + $0x110] sm:$0xff]
        %v369 = vld [vmem:[%s329 + $0x118] sm:$0xff]
        %v370 = vld [vmem:[%s329 + $0x120] sm:$0xff]
        %v371 = vld [vmem:[%s329 + $0x128] sm:$0xff]
        %v372 = vld [vmem:[%s329 + $0x130] sm:$0xff]
        %v373 = vld [vmem:[%s329 + $0x138] sm:$0xff]
        %v374 = vld [vmem:[%s329 + $0x140] sm:$0xff]
        %v375 = vld [vmem:[%s329 + $0x148] sm:$0xff]
        %v376 = vld [vmem:[%s329 + $0x150] sm:$0xff]
        %v377 = vld [vmem:[%s329 + $0x158] sm:$0xff]
        %v378 = vld [vmem:[%s329 + $0x160] sm:$0xff]
        %v379 = vld [vmem:[%s329 + $0x168] sm:$0xff]
        %v380 = vld [vmem:[%s329 + $0x170] sm:$0xff]
        %v381 = vld [vmem:[%s329 + $0x178] sm:$0xff]
        %v382 = vld [vmem:[%s329 + $0x180] sm:$0xff]
        %v383 = vld [vmem:[%s329 + $0x188] sm:$0xff]
        %v384 = vld [vmem:[%s329 + $0x190] sm:$0xff]
        %v385 = vld [vmem:[%s329 + $0x198] sm:$0xff]
        %v386 = vld [vmem:[%s329 + $0x1a0] sm:$0xff]
        %v387 = vld [vmem:[%s329 + $0x1a8] sm:$0xff]
        %v388 = vld [vmem:[%s329 + $0x1b0] sm:$0xff]
        %v389 = vld [vmem:[%s329 + $0x1b8] sm:$0xff]
        %v390 = vld [vmem:[%s329 + $0x1c0] sm:$0xff]
        %v391 = vld [vmem:[%s329 + $0x1c8] sm:$0xff]
        %v392 = vld [vmem:[%s329 + $0x1d0] sm:$0xff]
        %v393 = vld [vmem:[%s329 + $0x1d8] sm:$0xff]
        %v394 = vld [vmem:[%s329 + $0x1e0] sm:$0xff]
        %v395 = vld [vmem:[%s329 + $0x1e8] sm:$0xff]
        %v396 = vld [vmem:[%s329 + $0x1f0] sm:$0xff]
        %v397 = vld [vmem:[%s329 + $0x1f8] sm:$0xff]
        %v398 = vld [vmem:[%s329 + $0x200] sm:$0xff]
        %v399 = vld [vmem:[%s329 + $0x208] sm:$0xff]
        %v400 = vld [vmem:[%s329 + $0x210] sm:$0xff]
        %v401 = vld [vmem:[%s329 + $0x218] sm:$0xff]
        %v402 = vld [vmem:[%s329 + $0x220] sm:$0xff]
        %v403 = vld [vmem:[%s329 + $0x228] sm:$0xff]
        %v404 = vld [vmem:[%s329 + $0x230] sm:$0xff]
        %v405 = vld [vmem:[%s329 + $0x238] sm:$0xff]
        %v406 = vld [vmem:[%s329 + $0x240] sm:$0x3f]
        %v407 = vld [vmem:[%s329 + $0x248] sm:$0x3f]
        %v408 = vld [vmem:[%s329 + $0x250] sm:$0x3f]
        %v409 = vld [vmem:[%s329 + $0x258] sm:$0x3f]
        %v410 = vld [vmem:[%s3] sm:$0xf]
        %v411 = vld [vmem:[%s2] sm:$0xff]
        %v412 = vld [vmem:[%s2 + $0x8] sm:$0x7f]
        %414 = vset.pattern.permute.xlu0 0
        %415 = vperm.xlu0 %414, %v411
        %v416 = vpop.permute.xlu0 %415
        %419 = vset.pattern.permute.xlu0 0
        %420 = vperm.xlu0 %419, %v412
        %v421 = vpop.permute.xlu0 %420
        %vm423 = vcmask 179200
        %v425 = vsel %vm423, %v331, 0
        %v428 = vsel %vm423, %v333, 0
        %vm430 = vcmask 1045504
        %v432 = vsel %vm430, %v406, 0
        %v435 = vsel %vm430, %v407, 0
        %v438 = vsel %vm430, %v408, 0
        %v441 = vsel %vm430, %v409, 0
        %443 = vmatprep.subr.mxu0 %v395
        %444 = vmatpush1.msra.mxu0 %v394
        %445 = vmatprep.subr.mxu0 %v391
        %446 = vmatpush1.msra.mxu0 %v390
        %447 = vmatprep.subr.mxu0 %v387
        %448 = vmatpush1.msra.mxu0 %v386
        %449 = vmatprep.subr.mxu0 %v383
        %450 = vmatpush1.msra.mxu0 %v382
        %451 = vmatprep.subr.mxu0 %v379
        %452 = vmatpush1.msra.mxu0 %v378
        %453 = vmatprep.subr.mxu0 %v375
        %454 = vmatpush1.msra.mxu0 %v374
        %455 = vmatprep.subr.mxu0 %v371
        %456 = vmatpush1.msra.mxu0 %v370
        %457 = vmatprep.subr.mxu0 %v367
        %458 = vmatpush1.msra.mxu0 %v366
        %459 = vmatprep.subr.mxu0 %v363
        %460 = vmatpush1.msra.mxu0 %v362
        %461 = vmatprep.subr.mxu0 %v359
        %462 = vmatpush1.msra.mxu0 %v358
        %463 = vmatprep.subr.mxu0 %v355
        %464 = vmatpush1.msra.mxu0 %v354
        %465 = vmatprep.subr.mxu0 %v351
        %466 = vmatpush1.msra.mxu0 %v350
        %467 = vmatprep.subr.mxu0 %v347
        %468 = vmatpush1.msra.mxu0 %v346
        %469 = vmatprep.subr.mxu0 %v343
        %470 = vmatpush1.msra.mxu0 %v342
        %471 = vmatprep.subr.mxu0 %v339
        %472 = vmatpush1.msra.mxu0 %v338
        %473 = vmatprep.subr.mxu0 %v335
        %474 = vmatpush1.msra.mxu0 %v334
        %475 = vmatprep.subr.mxu0 0.0
        %476 = vmatpush2.msra.mxu0 0.0
        %477 = vmatprep.subr.mxu0 0.0
        %478 = vmatpush2.msra.mxu0 0.0
        %479 = vmatprep.subr.mxu0 0.0
        %480 = vmatpush2.msra.mxu0 0.0
        %481 = vmatprep.subr.mxu0 0.0
        %482 = vmatpush2.msra.mxu0 0.0
        %483 = vmatprep.subr.mxu0 0.0
        %484 = vmatpush2.msra.mxu0 0.0
        %485 = vmatprep.subr.mxu0 0.0
        %486 = vmatpush2.msra.mxu0 0.0
        %487 = vmatprep.subr.mxu0 0.0
        %488 = vmatpush2.msra.mxu0 0.0
        %489 = vmatprep.subr.mxu0 0.0
        %490 = vmatpush2.msra.mxu0 0.0
        %491 = vmatprep.subr.mxu0 0.0
        %492 = vmatpush2.msra.mxu0 0.0
        %493 = vmatprep.subr.mxu0 0.0
        %494 = vmatpush2.msra.mxu0 0.0
        %495 = vmatprep.subr.mxu0 0.0
        %496 = vmatpush2.msra.mxu0 0.0
        %497 = vmatprep.subr.mxu0 0.0
        %498 = vmatpush2.msra.mxu0 0.0
        %499 = vmatprep.subr.mxu0 0.0
        %500 = vmatpush2.msra.mxu0 0.0
        %501 = vmatprep.subr.mxu0 %v435
        %502 = vmatpush2.msra.mxu0 %v432
        %503 = vmatprep.subr.mxu0 %v403
        %504 = vmatpush2.msra.mxu0 %v402
        %505 = vmatprep.subr.mxu0 %v399
        %506 = vmatpush2.msra.mxu0 %v398
        %507 = vmatprep.mubr.f32.mxu0 %v425
        %508 = vmatmul.mubr.f32.gmra.mxu0 %v330
        %v509 = vpop.f32.mrf.mxu0
        %v510 = vadd.f32 %v416, %v509
        %v511 = vpop.f32.mrf.mxu0
        %v512 = vadd.f32 %v416, %v511
        %513 = vmatprep.mubr.f32.mxu0 %v428
        %514 = vmatmul.mubr.f32.gmra.mxu0 %v332
        %v515 = vpop.f32.mrf.mxu0
        %v516 = vadd.f32 %v421, %v515
        %v517 = vpop.f32.mrf.mxu0
        %v518 = vadd.f32 %v421, %v517
        %519 = vdwg.mxu0
        %520 = vmatprep.subr.mxu0 %v397
        %521 = vmatpush1.msra.mxu0 %v396
        %522 = vmatprep.subr.mxu0 %v393
        %523 = vmatpush1.msra.mxu0 %v392
        %524 = vmatprep.subr.mxu0 %v389
        %525 = vmatpush1.msra.mxu0 %v388
        %526 = vmatprep.subr.mxu0 %v385
        %527 = vmatpush1.msra.mxu0 %v384
        %528 = vmatprep.subr.mxu0 %v381
        %529 = vmatpush1.msra.mxu0 %v380
        %530 = vmatprep.subr.mxu0 %v377
        %531 = vmatpush1.msra.mxu0 %v376
        %532 = vmatprep.subr.mxu0 %v373
        %533 = vmatpush1.msra.mxu0 %v372
        %534 = vmatprep.subr.mxu0 %v369
        %535 = vmatpush1.msra.mxu0 %v368
        %536 = vmatprep.subr.mxu0 %v365
        %537 = vmatpush1.msra.mxu0 %v364
        %538 = vmatprep.subr.mxu0 %v361
        %539 = vmatpush1.msra.mxu0 %v360
        %540 = vmatprep.subr.mxu0 %v357
        %541 = vmatpush1.msra.mxu0 %v356
        %542 = vmatprep.subr.mxu0 %v353
        %543 = vmatpush1.msra.mxu0 %v352
        %544 = vmatprep.subr.mxu0 %v349
        %545 = vmatpush1.msra.mxu0 %v348
        %546 = vmatprep.subr.mxu0 %v345
        %547 = vmatpush1.msra.mxu0 %v344
        %548 = vmatprep.subr.mxu0 %v341
        %549 = vmatpush1.msra.mxu0 %v340
        %550 = vmatprep.subr.mxu0 %v337
        %551 = vmatpush1.msra.mxu0 %v336
        %552 = vmatprep.subr.mxu0 0.0
        %553 = vmatpush2.msra.mxu0 0.0
        %554 = vmatprep.subr.mxu0 0.0
        %555 = vmatpush2.msra.mxu0 0.0
        %556 = vmatprep.subr.mxu0 0.0
        %557 = vmatpush2.msra.mxu0 0.0
        %558 = vmatprep.subr.mxu0 0.0
        %559 = vmatpush2.msra.mxu0 0.0
        %560 = vmatprep.subr.mxu0 0.0
        %561 = vmatpush2.msra.mxu0 0.0
        %562 = vmatprep.subr.mxu0 0.0
        %563 = vmatpush2.msra.mxu0 0.0
        %564 = vmatprep.subr.mxu0 0.0
        %565 = vmatpush2.msra.mxu0 0.0
        %566 = vmatprep.subr.mxu0 0.0
        %567 = vmatpush2.msra.mxu0 0.0
        %568 = vmatprep.subr.mxu0 0.0
        %569 = vmatpush2.msra.mxu0 0.0
        %570 = vmatprep.subr.mxu0 0.0
        %571 = vmatpush2.msra.mxu0 0.0
        %572 = vmatprep.subr.mxu0 0.0
        %573 = vmatpush2.msra.mxu0 0.0
        %574 = vmatprep.subr.mxu0 0.0
        %575 = vmatpush2.msra.mxu0 0.0
        %576 = vmatprep.subr.mxu0 0.0
        %577 = vmatpush2.msra.mxu0 0.0
        %578 = vmatprep.subr.mxu0 %v441
        %579 = vmatpush2.msra.mxu0 %v438
        %580 = vmatprep.subr.mxu0 %v405
        %581 = vmatpush2.msra.mxu0 %v404
        %582 = vmatprep.subr.mxu0 %v401
        %583 = vmatpush2.msra.mxu0 %v400
        %584 = vmatprep.mubr.f32.mxu0 %v425
        %585 = vmatmul.mubr.f32.gmra.mxu0 %v330
        %v586 = vpop.f32.mrf.mxu0
        %v587 = vadd.f32 %v416, %v586
        %v588 = vpop.f32.mrf.mxu0
        %v589 = vadd.f32 %v416, %v588
        %590 = vmatprep.mubr.f32.mxu0 %v428
        %591 = vmatmul.mubr.f32.gmra.mxu0 %v332
        %v592 = vpop.f32.mrf.mxu0
        %v593 = vadd.f32 %v421, %v592
        %v594 = vpop.f32.mrf.mxu0
        %v595 = vadd.f32 %v421, %v594
        %596 = vdwg.mxu0
        %v597 = vmax.f32 %v510, 0.0
        %v598 = vmax.f32 %v512, 0.0
        %v599 = vmax.f32 %v587, 0.0
        %v600 = vmax.f32 %v589, 0.0
        %v601 = vmax.f32 %v516, 0.0
        %v602 = vmax.f32 %v518, 0.0
        %v603 = vmax.f32 %v593, 0.0
        %v604 = vmax.f32 %v595, 0.0
        %v606 = vlaneseq
        %v607 = vshrl.u32 %v606, 7
        %v608 = vsub.s32 0, %v607
        %v609 = vrot.slane %v410, %v608
        %v610 = vlaneseq
        %v611 = vshrl.u32 %v610, 7
        %v612 = vsub.s32 1, %v611
        %v613 = vrot.slane %v410, %v612
        %v614 = vlaneseq
        %v615 = vshrl.u32 %v614, 7
        %v616 = vsub.s32 2, %v615
        %v617 = vrot.slane %v410, %v616
        %v618 = vlaneseq
        %v619 = vshrl.u32 %v618, 7
        %v620 = vsub.s32 3, %v619
        %v621 = vrot.slane %v410, %v620
        %v626 = vmul.f32 %v609, %v597
        %v627 = vmul.f32 %v613, %v598
        %v628 = vmul.f32 %v617, %v599
        %v629 = vmul.f32 %v621, %v600
        %v630 = vmul.f32 %v609, %v601
        %v631 = vmul.f32 %v613, %v602
        %v632 = vmul.f32 %v617, %v603
        %v633 = vmul.f32 %v621, %v604
        %634 = vst [vmem:[#allocation2] sm:$0xff] %v626
        %635 = vst [vmem:[#allocation2 + $0x8] sm:$0xff] %v627
        %636 = vst [vmem:[#allocation2 + $0x10] sm:$0xff] %v628
        %637 = vst [vmem:[#allocation2 + $0x18] sm:$0xff] %v629
        %638 = vst [vmem:[#allocation2 + $0x20] sm:$0x7f] %v630
        %639 = vst [vmem:[#allocation2 + $0x28] sm:$0x7f] %v631
        %640 = vst [vmem:[#allocation2 + $0x30] sm:$0x7f] %v632
        %641 = vst [vmem:[#allocation2 + $0x38] sm:$0x7f] %v633
        %v642 = vld [vmem:[%s4] sm:$0x7]
        %v643 = vld [vmem:[#allocation2] sm:$0xff]
        %v644 = vld [vmem:[#allocation2 + $0x8] sm:$0xff]
        %v645 = vld [vmem:[#allocation2 + $0x10] sm:$0xff]
        %v646 = vld [vmem:[#allocation2 + $0x20] sm:$0x7f]
        %v647 = vld [vmem:[#allocation2 + $0x28] sm:$0x7f]
        %v648 = vld [vmem:[#allocation2 + $0x30] sm:$0x7f]
        %s649 = scalar_lea.vmem %s4, 4
        %v650 = vld [vmem:[%s649] sm:$0x7]
        %v651 = vld [vmem:[#allocation2 + $0x18] sm:$0xff]
        %v652 = vld [vmem:[#allocation2 + $0x38] sm:$0x7f]
        %661 = vrot.lane.b32.xlu0 %v643, 127
        %v662 = vpop.permute.xlu0 %661
        %663 = vrot.lane.b32.xlu0 %v644, 127
        %v664 = vpop.permute.xlu0 %663
        %665 = vrot.lane.b32.xlu0 %v645, 127
        %v666 = vpop.permute.xlu0 %665
        %667 = vrot.lane.b32.xlu0 %v651, 127
        %v668 = vpop.permute.xlu0 %667
        %669 = vrot.lane.b32.xlu0 %v646, 127
        %v670 = vpop.permute.xlu0 %669
        %671 = vrot.lane.b32.xlu0 %v647, 127
        %v672 = vpop.permute.xlu0 %671
        %673 = vrot.lane.b32.xlu0 %v648, 127
        %v674 = vpop.permute.xlu0 %673
        %675 = vrot.lane.b32.xlu0 %v652, 127
        %v676 = vpop.permute.xlu0 %675
        %vm677 = vcmask 1039360
        %v678 = vsel %vm677, %v662, %v664
        %v679 = vsel %vm677, %v664, %v666
        %v680 = vsel %vm677, %v666, %v668
        %v681 = vsel %vm677, %v670, %v672
        %v682 = vsel %vm677, %v672, %v674
        %v683 = vsel %vm677, %v674, %v676
        %vm687 = vcmask 121856
        %v689 = vsel %vm687, %v650, 0
        %vm691 = vcmask 1046528
        %v692 = vsel %vm691, %v681, 0
        %v694 = vsel %vm691, %v682, 0
        %v696 = vsel %vm691, %v683, 0
        %698 = vmatprep.subr.mxu0 0.0
        %699 = vmatpush1.msra.mxu0 0.0
        %700 = vmatprep.subr.mxu0 0.0
        %701 = vmatpush1.msra.mxu0 0.0
        %702 = vmatprep.subr.mxu0 0.0
        %703 = vmatpush1.msra.mxu0 0.0
        %704 = vmatprep.subr.mxu0 0.0
        %705 = vmatpush1.msra.mxu0 0.0
        %706 = vmatprep.subr.mxu0 0.0
        %707 = vmatpush1.msra.mxu0 0.0
        %708 = vmatprep.subr.mxu0 0.0
        %709 = vmatpush1.msra.mxu0 0.0
        %710 = vmatprep.subr.mxu0 0.0
        %711 = vmatpush1.msra.mxu0 0.0
        %712 = vmatprep.subr.mxu0 0.0
        %713 = vmatpush1.msra.mxu0 0.0
        %714 = vmatprep.subr.mxu0 0.0
        %715 = vmatpush1.msra.mxu0 0.0
        %716 = vmatprep.subr.mxu0 0.0
        %717 = vmatpush1.msra.mxu0 0.0
        %718 = vmatprep.subr.mxu0 0.0
        %719 = vmatpush1.msra.mxu0 0.0
        %720 = vmatprep.subr.mxu0 0.0
        %721 = vmatpush1.msra.mxu0 0.0
        %722 = vmatprep.subr.mxu0 0.0
        %723 = vmatpush1.msra.mxu0 0.0
        %724 = vmatprep.subr.mxu0 0.0
        %725 = vmatpush1.msra.mxu0 0.0
        %726 = vmatprep.subr.mxu0 %v694
        %727 = vmatpush1.msra.mxu0 %v692
        %728 = vmatprep.subr.mxu0 %v679
        %729 = vmatpush1.msra.mxu0 %v678
        %730 = vmatprep.subr.mxu0 0.0
        %731 = vmatpush2.msra.mxu0 0.0
        %732 = vmatprep.subr.mxu0 0.0
        %733 = vmatpush2.msra.mxu0 0.0
        %734 = vmatprep.subr.mxu0 0.0
        %735 = vmatpush2.msra.mxu0 0.0
        %736 = vmatprep.subr.mxu0 0.0
        %737 = vmatpush2.msra.mxu0 0.0
        %738 = vmatprep.subr.mxu0 0.0
        %739 = vmatpush2.msra.mxu0 0.0
        %740 = vmatprep.subr.mxu0 0.0
        %741 = vmatpush2.msra.mxu0 0.0
        %742 = vmatprep.subr.mxu0 0.0
        %743 = vmatpush2.msra.mxu0 0.0
        %744 = vmatprep.subr.mxu0 0.0
        %745 = vmatpush2.msra.mxu0 0.0
        %746 = vmatprep.subr.mxu0 0.0
        %747 = vmatpush2.msra.mxu0 0.0
        %748 = vmatprep.subr.mxu0 0.0
        %749 = vmatpush2.msra.mxu0 0.0
        %750 = vmatprep.subr.mxu0 0.0
        %751 = vmatpush2.msra.mxu0 0.0
        %752 = vmatprep.subr.mxu0 0.0
        %753 = vmatpush2.msra.mxu0 0.0
        %754 = vmatprep.subr.mxu0 0.0
        %755 = vmatpush2.msra.mxu0 0.0
        %756 = vmatprep.subr.mxu0 0.0
        %757 = vmatpush2.msra.mxu0 0.0
        %758 = vmatprep.subr.mxu0 0.0
        %759 = vmatpush2.msra.mxu0 0.0
        %760 = vmatprep.subr.mxu0 0.0
        %761 = vmatpush2.msra.mxu0 0.0
        %762 = vmatprep.mubr.f32.mxu0 0.0
        %763 = vmatmul.mubr.f32.gmra.mxu0 %v689
        %v764 = vpop.f32.mrf.mxu0
        %v765 = vadd.f32 0.0, %v764
        %v766 = vpop.f32.mrf.mxu0
        %v767 = vadd.f32 0.0, %v766
        %768 = vdwg.mxu0
        %769 = vmatprep.subr.mxu0 0.0
        %770 = vmatpush1.msra.mxu0 0.0
        %771 = vmatprep.subr.mxu0 0.0
        %772 = vmatpush1.msra.mxu0 0.0
        %773 = vmatprep.subr.mxu0 0.0
        %774 = vmatpush1.msra.mxu0 0.0
        %775 = vmatprep.subr.mxu0 0.0
        %776 = vmatpush1.msra.mxu0 0.0
        %777 = vmatprep.subr.mxu0 0.0
        %778 = vmatpush1.msra.mxu0 0.0
        %779 = vmatprep.subr.mxu0 0.0
        %780 = vmatpush1.msra.mxu0 0.0
        %781 = vmatprep.subr.mxu0 0.0
        %782 = vmatpush1.msra.mxu0 0.0
        %783 = vmatprep.subr.mxu0 0.0
        %784 = vmatpush1.msra.mxu0 0.0
        %785 = vmatprep.subr.mxu0 0.0
        %786 = vmatpush1.msra.mxu0 0.0
        %787 = vmatprep.subr.mxu0 0.0
        %788 = vmatpush1.msra.mxu0 0.0
        %789 = vmatprep.subr.mxu0 0.0
        %790 = vmatpush1.msra.mxu0 0.0
        %791 = vmatprep.subr.mxu0 0.0
        %792 = vmatpush1.msra.mxu0 0.0
        %793 = vmatprep.subr.mxu0 0.0
        %794 = vmatpush1.msra.mxu0 0.0
        %795 = vmatprep.subr.mxu0 0.0
        %796 = vmatpush1.msra.mxu0 0.0
        %797 = vmatprep.subr.mxu0 0.0
        %798 = vmatpush1.msra.mxu0 %v696
        %799 = vmatprep.subr.mxu0 0.0
        %800 = vmatpush1.msra.mxu0 %v680
        %801 = vmatprep.subr.mxu0 0.0
        %802 = vmatpush2.msra.mxu0 0.0
        %803 = vmatprep.subr.mxu0 0.0
        %804 = vmatpush2.msra.mxu0 0.0
        %805 = vmatprep.subr.mxu0 0.0
        %806 = vmatpush2.msra.mxu0 0.0
        %807 = vmatprep.subr.mxu0 0.0
        %808 = vmatpush2.msra.mxu0 0.0
        %809 = vmatprep.subr.mxu0 0.0
        %810 = vmatpush2.msra.mxu0 0.0
        %811 = vmatprep.subr.mxu0 0.0
        %812 = vmatpush2.msra.mxu0 0.0
        %813 = vmatprep.subr.mxu0 0.0
        %814 = vmatpush2.msra.mxu0 0.0
        %815 = vmatprep.subr.mxu0 0.0
        %816 = vmatpush2.msra.mxu0 0.0
        %817 = vmatprep.subr.mxu0 0.0
        %818 = vmatpush2.msra.mxu0 0.0
        %819 = vmatprep.subr.mxu0 0.0
        %820 = vmatpush2.msra.mxu0 0.0
        %821 = vmatprep.subr.mxu0 0.0
        %822 = vmatpush2.msra.mxu0 0.0
        %823 = vmatprep.subr.mxu0 0.0
        %824 = vmatpush2.msra.mxu0 0.0
        %825 = vmatprep.subr.mxu0 0.0
        %826 = vmatpush2.msra.mxu0 0.0
        %827 = vmatprep.subr.mxu0 0.0
        %828 = vmatpush2.msra.mxu0 0.0
        %829 = vmatprep.subr.mxu0 0.0
        %830 = vmatpush2.msra.mxu0 0.0
        %831 = vmatprep.subr.mxu0 0.0
        %832 = vmatpush2.msra.mxu0 0.0
        %833 = vmatprep.mubr.f32.mxu0 0.0
        %834 = vmatmul.mubr.f32.gmra.mxu0 %v689
        %v835 = vpop.f32.mrf.mxu0
        %v836 = vadd.f32 0.0, %v835
        %v837 = vpop.f32.mrf.mxu0
        %838 = vdwg.mxu0
        %v840 = vsel %vm687, %v642, 0
        %v842 = vsel %vm691, %v646, 0
        %v844 = vsel %vm691, %v647, 0
        %v846 = vsel %vm691, %v648, 0
        %848 = vmatprep.subr.mxu0 0.0
        %849 = vmatpush1.msra.mxu0 0.0
        %850 = vmatprep.subr.mxu0 0.0
        %851 = vmatpush1.msra.mxu0 0.0
        %852 = vmatprep.subr.mxu0 0.0
        %853 = vmatpush1.msra.mxu0 0.0
        %854 = vmatprep.subr.mxu0 0.0
        %855 = vmatpush1.msra.mxu0 0.0
        %856 = vmatprep.subr.mxu0 0.0
        %857 = vmatpush1.msra.mxu0 0.0
        %858 = vmatprep.subr.mxu0 0.0
        %859 = vmatpush1.msra.mxu0 0.0
        %860 = vmatprep.subr.mxu0 0.0
        %861 = vmatpush1.msra.mxu0 0.0
        %862 = vmatprep.subr.mxu0 0.0
        %863 = vmatpush1.msra.mxu0 0.0
        %864 = vmatprep.subr.mxu0 0.0
        %865 = vmatpush1.msra.mxu0 0.0
        %866 = vmatprep.subr.mxu0 0.0
        %867 = vmatpush1.msra.mxu0 0.0
        %868 = vmatprep.subr.mxu0 0.0
        %869 = vmatpush1.msra.mxu0 0.0
        %870 = vmatprep.subr.mxu0 0.0
        %871 = vmatpush1.msra.mxu0 0.0
        %872 = vmatprep.subr.mxu0 0.0
        %873 = vmatpush1.msra.mxu0 0.0
        %874 = vmatprep.subr.mxu0 0.0
        %875 = vmatpush1.msra.mxu0 0.0
        %876 = vmatprep.subr.mxu0 %v844
        %877 = vmatpush1.msra.mxu0 %v842
        %878 = vmatprep.subr.mxu0 %v644
        %879 = vmatpush1.msra.mxu0 %v643
        %880 = vmatprep.subr.mxu0 0.0
        %881 = vmatpush2.msra.mxu0 0.0
        %882 = vmatprep.subr.mxu0 0.0
        %883 = vmatpush2.msra.mxu0 0.0
        %884 = vmatprep.subr.mxu0 0.0
        %885 = vmatpush2.msra.mxu0 0.0
        %886 = vmatprep.subr.mxu0 0.0
        %887 = vmatpush2.msra.mxu0 0.0
        %888 = vmatprep.subr.mxu0 0.0
        %889 = vmatpush2.msra.mxu0 0.0
        %890 = vmatprep.subr.mxu0 0.0
        %891 = vmatpush2.msra.mxu0 0.0
        %892 = vmatprep.subr.mxu0 0.0
        %893 = vmatpush2.msra.mxu0 0.0
        %894 = vmatprep.subr.mxu0 0.0
        %895 = vmatpush2.msra.mxu0 0.0
        %896 = vmatprep.subr.mxu0 0.0
        %897 = vmatpush2.msra.mxu0 0.0
        %898 = vmatprep.subr.mxu0 0.0
        %899 = vmatpush2.msra.mxu0 0.0
        %900 = vmatprep.subr.mxu0 0.0
        %901 = vmatpush2.msra.mxu0 0.0
        %902 = vmatprep.subr.mxu0 0.0
        %903 = vmatpush2.msra.mxu0 0.0
        %904 = vmatprep.subr.mxu0 0.0
        %905 = vmatpush2.msra.mxu0 0.0
        %906 = vmatprep.subr.mxu0 0.0
        %907 = vmatpush2.msra.mxu0 0.0
        %908 = vmatprep.subr.mxu0 0.0
        %909 = vmatpush2.msra.mxu0 0.0
        %910 = vmatprep.subr.mxu0 0.0
        %911 = vmatpush2.msra.mxu0 0.0
        %912 = vmatprep.mubr.f32.mxu0 0.0
        %913 = vmatmul.mubr.f32.gmra.mxu0 %v840
        %v914 = vpop.f32.mrf.mxu0
        %v915 = vadd.f32 %v765, %v914
        %v916 = vpop.f32.mrf.mxu0
        %v917 = vadd.f32 %v767, %v916
        %918 = vdwg.mxu0
        %919 = vmatprep.subr.mxu0 0.0
        %920 = vmatpush1.msra.mxu0 0.0
        %921 = vmatprep.subr.mxu0 0.0
        %922 = vmatpush1.msra.mxu0 0.0
        %923 = vmatprep.subr.mxu0 0.0
        %924 = vmatpush1.msra.mxu0 0.0
        %925 = vmatprep.subr.mxu0 0.0
        %926 = vmatpush1.msra.mxu0 0.0
        %927 = vmatprep.subr.mxu0 0.0
        %928 = vmatpush1.msra.mxu0 0.0
        %929 = vmatprep.subr.mxu0 0.0
        %930 = vmatpush1.msra.mxu0 0.0
        %931 = vmatprep.subr.mxu0 0.0
        %932 = vmatpush1.msra.mxu0 0.0
        %933 = vmatprep.subr.mxu0 0.0
        %934 = vmatpush1.msra.mxu0 0.0
        %935 = vmatprep.subr.mxu0 0.0
        %936 = vmatpush1.msra.mxu0 0.0
        %937 = vmatprep.subr.mxu0 0.0
        %938 = vmatpush1.msra.mxu0 0.0
        %939 = vmatprep.subr.mxu0 0.0
        %940 = vmatpush1.msra.mxu0 0.0
        %941 = vmatprep.subr.mxu0 0.0
        %942 = vmatpush1.msra.mxu0 0.0
        %943 = vmatprep.subr.mxu0 0.0
        %944 = vmatpush1.msra.mxu0 0.0
        %945 = vmatprep.subr.mxu0 0.0
        %946 = vmatpush1.msra.mxu0 0.0
        %947 = vmatprep.subr.mxu0 0.0
        %948 = vmatpush1.msra.mxu0 %v846
        %949 = vmatprep.subr.mxu0 0.0
        %950 = vmatpush1.msra.mxu0 %v645
        %951 = vmatprep.subr.mxu0 0.0
        %952 = vmatpush2.msra.mxu0 0.0
        %953 = vmatprep.subr.mxu0 0.0
        %954 = vmatpush2.msra.mxu0 0.0
        %955 = vmatprep.subr.mxu0 0.0
        %956 = vmatpush2.msra.mxu0 0.0
        %957 = vmatprep.subr.mxu0 0.0
        %958 = vmatpush2.msra.mxu0 0.0
        %959 = vmatprep.subr.mxu0 0.0
        %960 = vmatpush2.msra.mxu0 0.0
        %961 = vmatprep.subr.mxu0 0.0
        %962 = vmatpush2.msra.mxu0 0.0
        %963 = vmatprep.subr.mxu0 0.0
        %964 = vmatpush2.msra.mxu0 0.0
        %965 = vmatprep.subr.mxu0 0.0
        %966 = vmatpush2.msra.mxu0 0.0
        %967 = vmatprep.subr.mxu0 0.0
        %968 = vmatpush2.msra.mxu0 0.0
        %969 = vmatprep.subr.mxu0 0.0
        %970 = vmatpush2.msra.mxu0 0.0
        %971 = vmatprep.subr.mxu0 0.0
        %972 = vmatpush2.msra.mxu0 0.0
        %973 = vmatprep.subr.mxu0 0.0
        %974 = vmatpush2.msra.mxu0 0.0
        %975 = vmatprep.subr.mxu0 0.0
        %976 = vmatpush2.msra.mxu0 0.0
        %977 = vmatprep.subr.mxu0 0.0
        %978 = vmatpush2.msra.mxu0 0.0
        %979 = vmatprep.subr.mxu0 0.0
        %980 = vmatpush2.msra.mxu0 0.0
        %981 = vmatprep.subr.mxu0 0.0
        %982 = vmatpush2.msra.mxu0 0.0
        %983 = vmatprep.mubr.f32.mxu0 0.0
        %984 = vmatmul.mubr.f32.gmra.mxu0 %v840
        %v985 = vpop.f32.mrf.mxu0
        %v986 = vadd.f32 %v836, %v985
        %v987 = vpop.f32.mrf.mxu0
        %988 = vdwg.mxu0
        %s989 = scalar_lea.vmem %s4, 8
        %v990 = vld [vmem:[%s989] sm:$0x7]
        %991 = vrot.lane.b32.xlu0 %v643, 126
        %v992 = vpop.permute.xlu0 %991
        %993 = vrot.lane.b32.xlu0 %v644, 126
        %v994 = vpop.permute.xlu0 %993
        %995 = vrot.lane.b32.xlu0 %v645, 126
        %v996 = vpop.permute.xlu0 %995
        %997 = vrot.lane.b32.xlu0 %v651, 126
        %v998 = vpop.permute.xlu0 %997
        %999 = vrot.lane.b32.xlu0 %v646, 126
        %v1000 = vpop.permute.xlu0 %999
        %1001 = vrot.lane.b32.xlu0 %v647, 126
        %v1002 = vpop.permute.xlu0 %1001
        %1003 = vrot.lane.b32.xlu0 %v648, 126
        %v1004 = vpop.permute.xlu0 %1003
        %1005 = vrot.lane.b32.xlu0 %v652, 126
        %v1006 = vpop.permute.xlu0 %1005
        %vm1007 = vcmask 1031168
        %v1008 = vsel %vm1007, %v992, %v994
        %v1009 = vsel %vm1007, %v994, %v996
        %v1010 = vsel %vm1007, %v996, %v998
        %v1011 = vsel %vm1007, %v1000, %v1002
        %v1012 = vsel %vm1007, %v1002, %v1004
        %v1013 = vsel %vm1007, %v1004, %v1006
        %v1018 = vsel %vm687, %v990, 0
        %v1020 = vsel %vm691, %v1011, 0
        %v1022 = vsel %vm691, %v1012, 0
        %v1024 = vsel %vm691, %v1013, 0
        %1026 = vmatprep.subr.mxu0 0.0
        %1027 = vmatpush1.msra.mxu0 0.0
        %1028 = vmatprep.subr.mxu0 0.0
        %1029 = vmatpush1.msra.mxu0 0.0
        %1030 = vmatprep.subr.mxu0 0.0
        %1031 = vmatpush1.msra.mxu0 0.0
        %1032 = vmatprep.subr.mxu0 0.0
        %1033 = vmatpush1.msra.mxu0 0.0
        %1034 = vmatprep.subr.mxu0 0.0
        %1035 = vmatpush1.msra.mxu0 0.0
        %1036 = vmatprep.subr.mxu0 0.0
        %1037 = vmatpush1.msra.mxu0 0.0
        %1038 = vmatprep.subr.mxu0 0.0
        %1039 = vmatpush1.msra.mxu0 0.0
        %1040 = vmatprep.subr.mxu0 0.0
        %1041 = vmatpush1.msra.mxu0 0.0
        %1042 = vmatprep.subr.mxu0 0.0
        %1043 = vmatpush1.msra.mxu0 0.0
        %1044 = vmatprep.subr.mxu0 0.0
        %1045 = vmatpush1.msra.mxu0 0.0
        %1046 = vmatprep.subr.mxu0 0.0
        %1047 = vmatpush1.msra.mxu0 0.0
        %1048 = vmatprep.subr.mxu0 0.0
        %1049 = vmatpush1.msra.mxu0 0.0
        %1050 = vmatprep.subr.mxu0 0.0
        %1051 = vmatpush1.msra.mxu0 0.0
        %1052 = vmatprep.subr.mxu0 0.0
        %1053 = vmatpush1.msra.mxu0 0.0
        %1054 = vmatprep.subr.mxu0 %v1022
        %1055 = vmatpush1.msra.mxu0 %v1020
        %1056 = vmatprep.subr.mxu0 %v1009
        %1057 = vmatpush1.msra.mxu0 %v1008
        %1058 = vmatprep.subr.mxu0 0.0
        %1059 = vmatpush2.msra.mxu0 0.0
        %1060 = vmatprep.subr.mxu0 0.0
        %1061 = vmatpush2.msra.mxu0 0.0
        %1062 = vmatprep.subr.mxu0 0.0
        %1063 = vmatpush2.msra.mxu0 0.0
        %1064 = vmatprep.subr.mxu0 0.0
        %1065 = vmatpush2.msra.mxu0 0.0
        %1066 = vmatprep.subr.mxu0 0.0
        %1067 = vmatpush2.msra.mxu0 0.0
        %1068 = vmatprep.subr.mxu0 0.0
        %1069 = vmatpush2.msra.mxu0 0.0
        %1070 = vmatprep.subr.mxu0 0.0
        %1071 = vmatpush2.msra.mxu0 0.0
        %1072 = vmatprep.subr.mxu0 0.0
        %1073 = vmatpush2.msra.mxu0 0.0
        %1074 = vmatprep.subr.mxu0 0.0
        %1075 = vmatpush2.msra.mxu0 0.0
        %1076 = vmatprep.subr.mxu0 0.0
        %1077 = vmatpush2.msra.mxu0 0.0
        %1078 = vmatprep.subr.mxu0 0.0
        %1079 = vmatpush2.msra.mxu0 0.0
        %1080 = vmatprep.subr.mxu0 0.0
        %1081 = vmatpush2.msra.mxu0 0.0
        %1082 = vmatprep.subr.mxu0 0.0
        %1083 = vmatpush2.msra.mxu0 0.0
        %1084 = vmatprep.subr.mxu0 0.0
        %1085 = vmatpush2.msra.mxu0 0.0
        %1086 = vmatprep.subr.mxu0 0.0
        %1087 = vmatpush2.msra.mxu0 0.0
        %1088 = vmatprep.subr.mxu0 0.0
        %1089 = vmatpush2.msra.mxu0 0.0
        %1090 = vmatprep.mubr.f32.mxu0 0.0
        %1091 = vmatmul.mubr.f32.gmra.mxu0 %v1018
        %v1092 = vpop.f32.mrf.mxu0
        %v1093 = vadd.f32 0.0, %v1092
        %v1094 = vpop.f32.mrf.mxu0
        %v1095 = vadd.f32 0.0, %v1094
        %1096 = vdwg.mxu0
        %1097 = vmatprep.subr.mxu0 0.0
        %1098 = vmatpush1.msra.mxu0 0.0
        %1099 = vmatprep.subr.mxu0 0.0
        %1100 = vmatpush1.msra.mxu0 0.0
        %1101 = vmatprep.subr.mxu0 0.0
        %1102 = vmatpush1.msra.mxu0 0.0
        %1103 = vmatprep.subr.mxu0 0.0
        %1104 = vmatpush1.msra.mxu0 0.0
        %1105 = vmatprep.subr.mxu0 0.0
        %1106 = vmatpush1.msra.mxu0 0.0
        %1107 = vmatprep.subr.mxu0 0.0
        %1108 = vmatpush1.msra.mxu0 0.0
        %1109 = vmatprep.subr.mxu0 0.0
        %1110 = vmatpush1.msra.mxu0 0.0
        %1111 = vmatprep.subr.mxu0 0.0
        %1112 = vmatpush1.msra.mxu0 0.0
        %1113 = vmatprep.subr.mxu0 0.0
        %1114 = vmatpush1.msra.mxu0 0.0
        %1115 = vmatprep.subr.mxu0 0.0
        %1116 = vmatpush1.msra.mxu0 0.0
        %1117 = vmatprep.subr.mxu0 0.0
        %1118 = vmatpush1.msra.mxu0 0.0
        %1119 = vmatprep.subr.mxu0 0.0
        %1120 = vmatpush1.msra.mxu0 0.0
        %1121 = vmatprep.subr.mxu0 0.0
        %1122 = vmatpush1.msra.mxu0 0.0
        %1123 = vmatprep.subr.mxu0 0.0
        %1124 = vmatpush1.msra.mxu0 0.0
        %1125 = vmatprep.subr.mxu0 0.0
        %1126 = vmatpush1.msra.mxu0 %v1024
        %1127 = vmatprep.subr.mxu0 0.0
        %1128 = vmatpush1.msra.mxu0 %v1010
        %1129 = vmatprep.subr.mxu0 0.0
        %1130 = vmatpush2.msra.mxu0 0.0
        %1131 = vmatprep.subr.mxu0 0.0
        %1132 = vmatpush2.msra.mxu0 0.0
        %1133 = vmatprep.subr.mxu0 0.0
        %1134 = vmatpush2.msra.mxu0 0.0
        %1135 = vmatprep.subr.mxu0 0.0
        %1136 = vmatpush2.msra.mxu0 0.0
        %1137 = vmatprep.subr.mxu0 0.0
        %1138 = vmatpush2.msra.mxu0 0.0
        %1139 = vmatprep.subr.mxu0 0.0
        %1140 = vmatpush2.msra.mxu0 0.0
        %1141 = vmatprep.subr.mxu0 0.0
        %1142 = vmatpush2.msra.mxu0 0.0
        %1143 = vmatprep.subr.mxu0 0.0
        %1144 = vmatpush2.msra.mxu0 0.0
        %1145 = vmatprep.subr.mxu0 0.0
        %1146 = vmatpush2.msra.mxu0 0.0
        %1147 = vmatprep.subr.mxu0 0.0
        %1148 = vmatpush2.msra.mxu0 0.0
        %1149 = vmatprep.subr.mxu0 0.0
        %1150 = vmatpush2.msra.mxu0 0.0
        %1151 = vmatprep.subr.mxu0 0.0
        %1152 = vmatpush2.msra.mxu0 0.0
        %1153 = vmatprep.subr.mxu0 0.0
        %1154 = vmatpush2.msra.mxu0 0.0
        %1155 = vmatprep.subr.mxu0 0.0
        %1156 = vmatpush2.msra.mxu0 0.0
        %1157 = vmatprep.subr.mxu0 0.0
        %1158 = vmatpush2.msra.mxu0 0.0
        %1159 = vmatprep.subr.mxu0 0.0
        %1160 = vmatpush2.msra.mxu0 0.0
        %1161 = vmatprep.mubr.f32.mxu0 0.0
        %1162 = vmatmul.mubr.f32.gmra.mxu0 %v1018
        %v1163 = vpop.f32.mrf.mxu0
        %v1164 = vadd.f32 0.0, %v1163
        %v1165 = vpop.f32.mrf.mxu0
        %1166 = vdwg.mxu0
        %v1167 = vadd.f32 %v915, %v1093
        %v1168 = vadd.f32 %v917, %v1095
        %v1169 = vadd.f32 %v986, %v1164
        %s1170 = scalar_lea.vmem %s4, 12
        %v1171 = vld [vmem:[%s1170] sm:$0x7]
        %1172 = vrot.lane.b32.xlu0 %v643, 108
        %v1173 = vpop.permute.xlu0 %1172
        %1174 = vrot.lane.b32.xlu0 %v644, 108
        %v1175 = vpop.permute.xlu0 %1174
        %1176 = vrot.lane.b32.xlu0 %v645, 108
        %v1177 = vpop.permute.xlu0 %1176
        %1178 = vrot.lane.b32.xlu0 %v651, 108
        %v1179 = vpop.permute.xlu0 %1178
        %1180 = vrot.lane.b32.xlu0 %v646, 108
        %v1181 = vpop.permute.xlu0 %1180
        %1182 = vrot.lane.b32.xlu0 %v647, 108
        %v1183 = vpop.permute.xlu0 %1182
        %1184 = vrot.lane.b32.xlu0 %v648, 108
        %v1185 = vpop.permute.xlu0 %1184
        %1186 = vrot.lane.b32.xlu0 %v652, 108
        %v1187 = vpop.permute.xlu0 %1186
        %vm1188 = vcmask 883712
        %v1189 = vsel %vm1188, %v1173, %v1175
        %v1190 = vsel %vm1188, %v1175, %v1177
        %v1191 = vsel %vm1188, %v1177, %v1179
        %v1192 = vsel %vm1188, %v1181, %v1183
        %v1193 = vsel %vm1188, %v1183, %v1185
        %v1194 = vsel %vm1188, %v1185, %v1187
        %v1199 = vsel %vm687, %v1171, 0
        %v1201 = vsel %vm691, %v1192, 0
        %v1203 = vsel %vm691, %v1193, 0
        %v1205 = vsel %vm691, %v1194, 0
        %1207 = vmatprep.subr.mxu0 0.0
        %1208 = vmatpush1.msra.mxu0 0.0
        %1209 = vmatprep.subr.mxu0 0.0
        %1210 = vmatpush1.msra.mxu0 0.0
        %1211 = vmatprep.subr.mxu0 0.0
        %1212 = vmatpush1.msra.mxu0 0.0
        %1213 = vmatprep.subr.mxu0 0.0
        %1214 = vmatpush1.msra.mxu0 0.0
        %1215 = vmatprep.subr.mxu0 0.0
        %1216 = vmatpush1.msra.mxu0 0.0
        %1217 = vmatprep.subr.mxu0 0.0
        %1218 = vmatpush1.msra.mxu0 0.0
        %1219 = vmatprep.subr.mxu0 0.0
        %1220 = vmatpush1.msra.mxu0 0.0
        %1221 = vmatprep.subr.mxu0 0.0
        %1222 = vmatpush1.msra.mxu0 0.0
        %1223 = vmatprep.subr.mxu0 0.0
        %1224 = vmatpush1.msra.mxu0 0.0
        %1225 = vmatprep.subr.mxu0 0.0
        %1226 = vmatpush1.msra.mxu0 0.0
        %1227 = vmatprep.subr.mxu0 0.0
        %1228 = vmatpush1.msra.mxu0 0.0
        %1229 = vmatprep.subr.mxu0 0.0
        %1230 = vmatpush1.msra.mxu0 0.0
        %1231 = vmatprep.subr.mxu0 0.0
        %1232 = vmatpush1.msra.mxu0 0.0
        %1233 = vmatprep.subr.mxu0 0.0
        %1234 = vmatpush1.msra.mxu0 0.0
        %1235 = vmatprep.subr.mxu0 %v1203
        %1236 = vmatpush1.msra.mxu0 %v1201
        %1237 = vmatprep.subr.mxu0 %v1190
        %1238 = vmatpush1.msra.mxu0 %v1189
        %1239 = vmatprep.subr.mxu0 0.0
        %1240 = vmatpush2.msra.mxu0 0.0
        %1241 = vmatprep.subr.mxu0 0.0
        %1242 = vmatpush2.msra.mxu0 0.0
        %1243 = vmatprep.subr.mxu0 0.0
        %1244 = vmatpush2.msra.mxu0 0.0
        %1245 = vmatprep.subr.mxu0 0.0
        %1246 = vmatpush2.msra.mxu0 0.0
        %1247 = vmatprep.subr.mxu0 0.0
        %1248 = vmatpush2.msra.mxu0 0.0
        %1249 = vmatprep.subr.mxu0 0.0
        %1250 = vmatpush2.msra.mxu0 0.0
        %1251 = vmatprep.subr.mxu0 0.0
        %1252 = vmatpush2.msra.mxu0 0.0
        %1253 = vmatprep.subr.mxu0 0.0
        %1254 = vmatpush2.msra.mxu0 0.0
        %1255 = vmatprep.subr.mxu0 0.0
        %1256 = vmatpush2.msra.mxu0 0.0
        %1257 = vmatprep.subr.mxu0 0.0
        %1258 = vmatpush2.msra.mxu0 0.0
        %1259 = vmatprep.subr.mxu0 0.0
        %1260 = vmatpush2.msra.mxu0 0.0
        %1261 = vmatprep.subr.mxu0 0.0
        %1262 = vmatpush2.msra.mxu0 0.0
        %1263 = vmatprep.subr.mxu0 0.0
        %1264 = vmatpush2.msra.mxu0 0.0
        %1265 = vmatprep.subr.mxu0 0.0
        %1266 = vmatpush2.msra.mxu0 0.0
        %1267 = vmatprep.subr.mxu0 0.0
        %1268 = vmatpush2.msra.mxu0 0.0
        %1269 = vmatprep.subr.mxu0 0.0
        %1270 = vmatpush2.msra.mxu0 0.0
        %1271 = vmatprep.mubr.f32.mxu0 0.0
        %1272 = vmatmul.mubr.f32.gmra.mxu0 %v1199
        %v1273 = vpop.f32.mrf.mxu0
        %v1274 = vadd.f32 0.0, %v1273
        %v1275 = vpop.f32.mrf.mxu0
        %v1276 = vadd.f32 0.0, %v1275
        %1277 = vdwg.mxu0
        %1278 = vmatprep.subr.mxu0 0.0
        %1279 = vmatpush1.msra.mxu0 0.0
        %1280 = vmatprep.subr.mxu0 0.0
        %1281 = vmatpush1.msra.mxu0 0.0
        %1282 = vmatprep.subr.mxu0 0.0
        %1283 = vmatpush1.msra.mxu0 0.0
        %1284 = vmatprep.subr.mxu0 0.0
        %1285 = vmatpush1.msra.mxu0 0.0
        %1286 = vmatprep.subr.mxu0 0.0
        %1287 = vmatpush1.msra.mxu0 0.0
        %1288 = vmatprep.subr.mxu0 0.0
        %1289 = vmatpush1.msra.mxu0 0.0
        %1290 = vmatprep.subr.mxu0 0.0
        %1291 = vmatpush1.msra.mxu0 0.0
        %1292 = vmatprep.subr.mxu0 0.0
        %1293 = vmatpush1.msra.mxu0 0.0
        %1294 = vmatprep.subr.mxu0 0.0
        %1295 = vmatpush1.msra.mxu0 0.0
        %1296 = vmatprep.subr.mxu0 0.0
        %1297 = vmatpush1.msra.mxu0 0.0
        %1298 = vmatprep.subr.mxu0 0.0
        %1299 = vmatpush1.msra.mxu0 0.0
        %1300 = vmatprep.subr.mxu0 0.0
        %1301 = vmatpush1.msra.mxu0 0.0
        %1302 = vmatprep.subr.mxu0 0.0
        %1303 = vmatpush1.msra.mxu0 0.0
        %1304 = vmatprep.subr.mxu0 0.0
        %1305 = vmatpush1.msra.mxu0 0.0
        %1306 = vmatprep.subr.mxu0 0.0
        %1307 = vmatpush1.msra.mxu0 %v1205
        %1308 = vmatprep.subr.mxu0 0.0
        %1309 = vmatpush1.msra.mxu0 %v1191
        %1310 = vmatprep.subr.mxu0 0.0
        %1311 = vmatpush2.msra.mxu0 0.0
        %1312 = vmatprep.subr.mxu0 0.0
        %1313 = vmatpush2.msra.mxu0 0.0
        %1314 = vmatprep.subr.mxu0 0.0
        %1315 = vmatpush2.msra.mxu0 0.0
        %1316 = vmatprep.subr.mxu0 0.0
        %1317 = vmatpush2.msra.mxu0 0.0
        %1318 = vmatprep.subr.mxu0 0.0
        %1319 = vmatpush2.msra.mxu0 0.0
        %1320 = vmatprep.subr.mxu0 0.0
        %1321 = vmatpush2.msra.mxu0 0.0
        %1322 = vmatprep.subr.mxu0 0.0
        %1323 = vmatpush2.msra.mxu0 0.0
        %1324 = vmatprep.subr.mxu0 0.0
        %1325 = vmatpush2.msra.mxu0 0.0
        %1326 = vmatprep.subr.mxu0 0.0
        %1327 = vmatpush2.msra.mxu0 0.0
        %1328 = vmatprep.subr.mxu0 0.0
        %1329 = vmatpush2.msra.mxu0 0.0
        %1330 = vmatprep.subr.mxu0 0.0
        %1331 = vmatpush2.msra.mxu0 0.0
        %1332 = vmatprep.subr.mxu0 0.0
        %1333 = vmatpush2.msra.mxu0 0.0
        %1334 = vmatprep.subr.mxu0 0.0
        %1335 = vmatpush2.msra.mxu0 0.0
        %1336 = vmatprep.subr.mxu0 0.0
        %1337 = vmatpush2.msra.mxu0 0.0
        %1338 = vmatprep.subr.mxu0 0.0
        %1339 = vmatpush2.msra.mxu0 0.0
        %1340 = vmatprep.subr.mxu0 0.0
        %1341 = vmatpush2.msra.mxu0 0.0
        %1342 = vmatprep.mubr.f32.mxu0 0.0
        %1343 = vmatmul.mubr.f32.gmra.mxu0 %v1199
        %v1344 = vpop.f32.mrf.mxu0
        %v1345 = vadd.f32 0.0, %v1344
        %v1346 = vpop.f32.mrf.mxu0
        %1347 = vdwg.mxu0
        %v1348 = vadd.f32 %v1167, %v1274
        %v1349 = vadd.f32 %v1168, %v1276
        %v1350 = vadd.f32 %v1169, %v1345
        %s1351 = scalar_lea.vmem %s4, 16
        %v1352 = vld [vmem:[%s1351] sm:$0x7]
        %1353 = vrot.lane.b32.xlu0 %v643, 107
        %v1354 = vpop.permute.xlu0 %1353
        %1355 = vrot.lane.b32.xlu0 %v644, 107
        %v1356 = vpop.permute.xlu0 %1355
        %1357 = vrot.lane.b32.xlu0 %v645, 107
        %v1358 = vpop.permute.xlu0 %1357
        %1359 = vrot.lane.b32.xlu0 %v651, 107
        %v1360 = vpop.permute.xlu0 %1359
        %1361 = vrot.lane.b32.xlu0 %v646, 107
        %v1362 = vpop.permute.xlu0 %1361
        %1363 = vrot.lane.b32.xlu0 %v647, 107
        %v1364 = vpop.permute.xlu0 %1363
        %1365 = vrot.lane.b32.xlu0 %v648, 107
        %v1366 = vpop.permute.xlu0 %1365
        %1367 = vrot.lane.b32.xlu0 %v652, 107
        %v1368 = vpop.permute.xlu0 %1367
        %vm1369 = vcmask 875520
        %v1370 = vsel %vm1369, %v1354, %v1356
        %v1371 = vsel %vm1369, %v1356, %v1358
        %v1372 = vsel %vm1369, %v1358, %v1360
        %v1373 = vsel %vm1369, %v1362, %v1364
        %v1374 = vsel %vm1369, %v1364, %v1366
        %v1375 = vsel %vm1369, %v1366, %v1368
        %v1380 = vsel %vm687, %v1352, 0
        %v1382 = vsel %vm691, %v1373, 0
        %v1384 = vsel %vm691, %v1374, 0
        %v1386 = vsel %vm691, %v1375, 0
        %1388 = vmatprep.subr.mxu0 0.0
        %1389 = vmatpush1.msra.mxu0 0.0
        %1390 = vmatprep.subr.mxu0 0.0
        %1391 = vmatpush1.msra.mxu0 0.0
        %1392 = vmatprep.subr.mxu0 0.0
        %1393 = vmatpush1.msra.mxu0 0.0
        %1394 = vmatprep.subr.mxu0 0.0
        %1395 = vmatpush1.msra.mxu0 0.0
        %1396 = vmatprep.subr.mxu0 0.0
        %1397 = vmatpush1.msra.mxu0 0.0
        %1398 = vmatprep.subr.mxu0 0.0
        %1399 = vmatpush1.msra.mxu0 0.0
        %1400 = vmatprep.subr.mxu0 0.0
        %1401 = vmatpush1.msra.mxu0 0.0
        %1402 = vmatprep.subr.mxu0 0.0
        %1403 = vmatpush1.msra.mxu0 0.0
        %1404 = vmatprep.subr.mxu0 0.0
        %1405 = vmatpush1.msra.mxu0 0.0
        %1406 = vmatprep.subr.mxu0 0.0
        %1407 = vmatpush1.msra.mxu0 0.0
        %1408 = vmatprep.subr.mxu0 0.0
        %1409 = vmatpush1.msra.mxu0 0.0
        %1410 = vmatprep.subr.mxu0 0.0
        %1411 = vmatpush1.msra.mxu0 0.0
        %1412 = vmatprep.subr.mxu0 0.0
        %1413 = vmatpush1.msra.mxu0 0.0
        %1414 = vmatprep.subr.mxu0 0.0
        %1415 = vmatpush1.msra.mxu0 0.0
        %1416 = vmatprep.subr.mxu0 %v1384
        %1417 = vmatpush1.msra.mxu0 %v1382
        %1418 = vmatprep.subr.mxu0 %v1371
        %1419 = vmatpush1.msra.mxu0 %v1370
        %1420 = vmatprep.subr.mxu0 0.0
        %1421 = vmatpush2.msra.mxu0 0.0
        %1422 = vmatprep.subr.mxu0 0.0
        %1423 = vmatpush2.msra.mxu0 0.0
        %1424 = vmatprep.subr.mxu0 0.0
        %1425 = vmatpush2.msra.mxu0 0.0
        %1426 = vmatprep.subr.mxu0 0.0
        %1427 = vmatpush2.msra.mxu0 0.0
        %1428 = vmatprep.subr.mxu0 0.0
        %1429 = vmatpush2.msra.mxu0 0.0
        %1430 = vmatprep.subr.mxu0 0.0
        %1431 = vmatpush2.msra.mxu0 0.0
        %1432 = vmatprep.subr.mxu0 0.0
        %1433 = vmatpush2.msra.mxu0 0.0
        %1434 = vmatprep.subr.mxu0 0.0
        %1435 = vmatpush2.msra.mxu0 0.0
        %1436 = vmatprep.subr.mxu0 0.0
        %1437 = vmatpush2.msra.mxu0 0.0
        %1438 = vmatprep.subr.mxu0 0.0
        %1439 = vmatpush2.msra.mxu0 0.0
        %1440 = vmatprep.subr.mxu0 0.0
        %1441 = vmatpush2.msra.mxu0 0.0
        %1442 = vmatprep.subr.mxu0 0.0
        %1443 = vmatpush2.msra.mxu0 0.0
        %1444 = vmatprep.subr.mxu0 0.0
        %1445 = vmatpush2.msra.mxu0 0.0
        %1446 = vmatprep.subr.mxu0 0.0
        %1447 = vmatpush2.msra.mxu0 0.0
        %1448 = vmatprep.subr.mxu0 0.0
        %1449 = vmatpush2.msra.mxu0 0.0
        %1450 = vmatprep.subr.mxu0 0.0
        %1451 = vmatpush2.msra.mxu0 0.0
        %1452 = vmatprep.mubr.f32.mxu0 0.0
        %1453 = vmatmul.mubr.f32.gmra.mxu0 %v1380
        %v1454 = vpop.f32.mrf.mxu0
        %v1455 = vadd.f32 0.0, %v1454
        %v1456 = vpop.f32.mrf.mxu0
        %v1457 = vadd.f32 0.0, %v1456
        %1458 = vdwg.mxu0
        %1459 = vmatprep.subr.mxu0 0.0
        %1460 = vmatpush1.msra.mxu0 0.0
        %1461 = vmatprep.subr.mxu0 0.0
        %1462 = vmatpush1.msra.mxu0 0.0
        %1463 = vmatprep.subr.mxu0 0.0
        %1464 = vmatpush1.msra.mxu0 0.0
        %1465 = vmatprep.subr.mxu0 0.0
        %1466 = vmatpush1.msra.mxu0 0.0
        %1467 = vmatprep.subr.mxu0 0.0
        %1468 = vmatpush1.msra.mxu0 0.0
        %1469 = vmatprep.subr.mxu0 0.0
        %1470 = vmatpush1.msra.mxu0 0.0
        %1471 = vmatprep.subr.mxu0 0.0
        %1472 = vmatpush1.msra.mxu0 0.0
        %1473 = vmatprep.subr.mxu0 0.0
        %1474 = vmatpush1.msra.mxu0 0.0
        %1475 = vmatprep.subr.mxu0 0.0
        %1476 = vmatpush1.msra.mxu0 0.0
        %1477 = vmatprep.subr.mxu0 0.0
        %1478 = vmatpush1.msra.mxu0 0.0
        %1479 = vmatprep.subr.mxu0 0.0
        %1480 = vmatpush1.msra.mxu0 0.0
        %1481 = vmatprep.subr.mxu0 0.0
        %1482 = vmatpush1.msra.mxu0 0.0
        %1483 = vmatprep.subr.mxu0 0.0
        %1484 = vmatpush1.msra.mxu0 0.0
        %1485 = vmatprep.subr.mxu0 0.0
        %1486 = vmatpush1.msra.mxu0 0.0
        %1487 = vmatprep.subr.mxu0 0.0
        %1488 = vmatpush1.msra.mxu0 %v1386
        %1489 = vmatprep.subr.mxu0 0.0
        %1490 = vmatpush1.msra.mxu0 %v1372
        %1491 = vmatprep.subr.mxu0 0.0
        %1492 = vmatpush2.msra.mxu0 0.0
        %1493 = vmatprep.subr.mxu0 0.0
        %1494 = vmatpush2.msra.mxu0 0.0
        %1495 = vmatprep.subr.mxu0 0.0
        %1496 = vmatpush2.msra.mxu0 0.0
        %1497 = vmatprep.subr.mxu0 0.0
        %1498 = vmatpush2.msra.mxu0 0.0
        %1499 = vmatprep.subr.mxu0 0.0
        %1500 = vmatpush2.msra.mxu0 0.0
        %1501 = vmatprep.subr.mxu0 0.0
        %1502 = vmatpush2.msra.mxu0 0.0
        %1503 = vmatprep.subr.mxu0 0.0
        %1504 = vmatpush2.msra.mxu0 0.0
        %1505 = vmatprep.subr.mxu0 0.0
        %1506 = vmatpush2.msra.mxu0 0.0
        %1507 = vmatprep.subr.mxu0 0.0
        %1508 = vmatpush2.msra.mxu0 0.0
        %1509 = vmatprep.subr.mxu0 0.0
        %1510 = vmatpush2.msra.mxu0 0.0
        %1511 = vmatprep.subr.mxu0 0.0
        %1512 = vmatpush2.msra.mxu0 0.0
        %1513 = vmatprep.subr.mxu0 0.0
        %1514 = vmatpush2.msra.mxu0 0.0
        %1515 = vmatprep.subr.mxu0 0.0
        %1516 = vmatpush2.msra.mxu0 0.0
        %1517 = vmatprep.subr.mxu0 0.0
        %1518 = vmatpush2.msra.mxu0 0.0
        %1519 = vmatprep.subr.mxu0 0.0
        %1520 = vmatpush2.msra.mxu0 0.0
        %1521 = vmatprep.subr.mxu0 0.0
        %1522 = vmatpush2.msra.mxu0 0.0
        %1523 = vmatprep.mubr.f32.mxu0 0.0
        %1524 = vmatmul.mubr.f32.gmra.mxu0 %v1380
        %v1525 = vpop.f32.mrf.mxu0
        %v1526 = vadd.f32 0.0, %v1525
        %v1527 = vpop.f32.mrf.mxu0
        %1528 = vdwg.mxu0
        %v1529 = vadd.f32 %v1348, %v1455
        %v1530 = vadd.f32 %v1349, %v1457
        %v1531 = vadd.f32 %v1350, %v1526
        %s1532 = scalar_lea.vmem %s4, 20
        %v1533 = vld [vmem:[%s1532] sm:$0x7]
        %1534 = vrot.lane.b32.xlu0 %v643, 106
        %v1535 = vpop.permute.xlu0 %1534
        %1536 = vrot.lane.b32.xlu0 %v644, 106
        %v1537 = vpop.permute.xlu0 %1536
        %1538 = vrot.lane.b32.xlu0 %v645, 106
        %v1539 = vpop.permute.xlu0 %1538
        %1540 = vrot.lane.b32.xlu0 %v651, 106
        %v1541 = vpop.permute.xlu0 %1540
        %1542 = vrot.lane.b32.xlu0 %v646, 106
        %v1543 = vpop.permute.xlu0 %1542
        %1544 = vrot.lane.b32.xlu0 %v647, 106
        %v1545 = vpop.permute.xlu0 %1544
        %1546 = vrot.lane.b32.xlu0 %v648, 106
        %v1547 = vpop.permute.xlu0 %1546
        %1548 = vrot.lane.b32.xlu0 %v652, 106
        %v1549 = vpop.permute.xlu0 %1548
        %vm1550 = vcmask 867328
        %v1551 = vsel %vm1550, %v1535, %v1537
        %v1552 = vsel %vm1550, %v1537, %v1539
        %v1553 = vsel %vm1550, %v1539, %v1541
        %v1554 = vsel %vm1550, %v1543, %v1545
        %v1555 = vsel %vm1550, %v1545, %v1547
        %v1556 = vsel %vm1550, %v1547, %v1549
        %v1561 = vsel %vm687, %v1533, 0
        %v1563 = vsel %vm691, %v1554, 0
        %v1565 = vsel %vm691, %v1555, 0
        %v1567 = vsel %vm691, %v1556, 0
        %1569 = vmatprep.subr.mxu0 0.0
        %1570 = vmatpush1.msra.mxu0 0.0
        %1571 = vmatprep.subr.mxu0 0.0
        %1572 = vmatpush1.msra.mxu0 0.0
        %1573 = vmatprep.subr.mxu0 0.0
        %1574 = vmatpush1.msra.mxu0 0.0
        %1575 = vmatprep.subr.mxu0 0.0
        %1576 = vmatpush1.msra.mxu0 0.0
        %1577 = vmatprep.subr.mxu0 0.0
        %1578 = vmatpush1.msra.mxu0 0.0
        %1579 = vmatprep.subr.mxu0 0.0
        %1580 = vmatpush1.msra.mxu0 0.0
        %1581 = vmatprep.subr.mxu0 0.0
        %1582 = vmatpush1.msra.mxu0 0.0
        %1583 = vmatprep.subr.mxu0 0.0
        %1584 = vmatpush1.msra.mxu0 0.0
        %1585 = vmatprep.subr.mxu0 0.0
        %1586 = vmatpush1.msra.mxu0 0.0
        %1587 = vmatprep.subr.mxu0 0.0
        %1588 = vmatpush1.msra.mxu0 0.0
        %1589 = vmatprep.subr.mxu0 0.0
        %1590 = vmatpush1.msra.mxu0 0.0
        %1591 = vmatprep.subr.mxu0 0.0
        %1592 = vmatpush1.msra.mxu0 0.0
        %1593 = vmatprep.subr.mxu0 0.0
        %1594 = vmatpush1.msra.mxu0 0.0
        %1595 = vmatprep.subr.mxu0 0.0
        %1596 = vmatpush1.msra.mxu0 0.0
        %1597 = vmatprep.subr.mxu0 %v1565
        %1598 = vmatpush1.msra.mxu0 %v1563
        %1599 = vmatprep.subr.mxu0 %v1552
        %1600 = vmatpush1.msra.mxu0 %v1551
        %1601 = vmatprep.subr.mxu0 0.0
        %1602 = vmatpush2.msra.mxu0 0.0
        %1603 = vmatprep.subr.mxu0 0.0
        %1604 = vmatpush2.msra.mxu0 0.0
        %1605 = vmatprep.subr.mxu0 0.0
        %1606 = vmatpush2.msra.mxu0 0.0
        %1607 = vmatprep.subr.mxu0 0.0
        %1608 = vmatpush2.msra.mxu0 0.0
        %1609 = vmatprep.subr.mxu0 0.0
        %1610 = vmatpush2.msra.mxu0 0.0
        %1611 = vmatprep.subr.mxu0 0.0
        %1612 = vmatpush2.msra.mxu0 0.0
        %1613 = vmatprep.subr.mxu0 0.0
        %1614 = vmatpush2.msra.mxu0 0.0
        %1615 = vmatprep.subr.mxu0 0.0
        %1616 = vmatpush2.msra.mxu0 0.0
        %1617 = vmatprep.subr.mxu0 0.0
        %1618 = vmatpush2.msra.mxu0 0.0
        %1619 = vmatprep.subr.mxu0 0.0
        %1620 = vmatpush2.msra.mxu0 0.0
        %1621 = vmatprep.subr.mxu0 0.0
        %1622 = vmatpush2.msra.mxu0 0.0
        %1623 = vmatprep.subr.mxu0 0.0
        %1624 = vmatpush2.msra.mxu0 0.0
        %1625 = vmatprep.subr.mxu0 0.0
        %1626 = vmatpush2.msra.mxu0 0.0
        %1627 = vmatprep.subr.mxu0 0.0
        %1628 = vmatpush2.msra.mxu0 0.0
        %1629 = vmatprep.subr.mxu0 0.0
        %1630 = vmatpush2.msra.mxu0 0.0
        %1631 = vmatprep.subr.mxu0 0.0
        %1632 = vmatpush2.msra.mxu0 0.0
        %1633 = vmatprep.mubr.f32.mxu0 0.0
        %1634 = vmatmul.mubr.f32.gmra.mxu0 %v1561
        %v1635 = vpop.f32.mrf.mxu0
        %v1636 = vadd.f32 0.0, %v1635
        %v1637 = vpop.f32.mrf.mxu0
        %v1638 = vadd.f32 0.0, %v1637
        %1639 = vdwg.mxu0
        %1640 = vmatprep.subr.mxu0 0.0
        %1641 = vmatpush1.msra.mxu0 0.0
        %1642 = vmatprep.subr.mxu0 0.0
        %1643 = vmatpush1.msra.mxu0 0.0
        %1644 = vmatprep.subr.mxu0 0.0
        %1645 = vmatpush1.msra.mxu0 0.0
        %1646 = vmatprep.subr.mxu0 0.0
        %1647 = vmatpush1.msra.mxu0 0.0
        %1648 = vmatprep.subr.mxu0 0.0
        %1649 = vmatpush1.msra.mxu0 0.0
        %1650 = vmatprep.subr.mxu0 0.0
        %1651 = vmatpush1.msra.mxu0 0.0
        %1652 = vmatprep.subr.mxu0 0.0
        %1653 = vmatpush1.msra.mxu0 0.0
        %1654 = vmatprep.subr.mxu0 0.0
        %1655 = vmatpush1.msra.mxu0 0.0
        %1656 = vmatprep.subr.mxu0 0.0
        %1657 = vmatpush1.msra.mxu0 0.0
        %1658 = vmatprep.subr.mxu0 0.0
        %1659 = vmatpush1.msra.mxu0 0.0
        %1660 = vmatprep.subr.mxu0 0.0
        %1661 = vmatpush1.msra.mxu0 0.0
        %1662 = vmatprep.subr.mxu0 0.0
        %1663 = vmatpush1.msra.mxu0 0.0
        %1664 = vmatprep.subr.mxu0 0.0
        %1665 = vmatpush1.msra.mxu0 0.0
        %1666 = vmatprep.subr.mxu0 0.0
        %1667 = vmatpush1.msra.mxu0 0.0
        %1668 = vmatprep.subr.mxu0 0.0
        %1669 = vmatpush1.msra.mxu0 %v1567
        %1670 = vmatprep.subr.mxu0 0.0
        %1671 = vmatpush1.msra.mxu0 %v1553
        %1672 = vmatprep.subr.mxu0 0.0
        %1673 = vmatpush2.msra.mxu0 0.0
        %1674 = vmatprep.subr.mxu0 0.0
        %1675 = vmatpush2.msra.mxu0 0.0
        %1676 = vmatprep.subr.mxu0 0.0
        %1677 = vmatpush2.msra.mxu0 0.0
        %1678 = vmatprep.subr.mxu0 0.0
        %1679 = vmatpush2.msra.mxu0 0.0
        %1680 = vmatprep.subr.mxu0 0.0
        %1681 = vmatpush2.msra.mxu0 0.0
        %1682 = vmatprep.subr.mxu0 0.0
        %1683 = vmatpush2.msra.mxu0 0.0
        %1684 = vmatprep.subr.mxu0 0.0
        %1685 = vmatpush2.msra.mxu0 0.0
        %1686 = vmatprep.subr.mxu0 0.0
        %1687 = vmatpush2.msra.mxu0 0.0
        %1688 = vmatprep.subr.mxu0 0.0
        %1689 = vmatpush2.msra.mxu0 0.0
        %1690 = vmatprep.subr.mxu0 0.0
        %1691 = vmatpush2.msra.mxu0 0.0
        %1692 = vmatprep.subr.mxu0 0.0
        %1693 = vmatpush2.msra.mxu0 0.0
        %1694 = vmatprep.subr.mxu0 0.0
        %1695 = vmatpush2.msra.mxu0 0.0
        %1696 = vmatprep.subr.mxu0 0.0
        %1697 = vmatpush2.msra.mxu0 0.0
        %1698 = vmatprep.subr.mxu0 0.0
        %1699 = vmatpush2.msra.mxu0 0.0
        %1700 = vmatprep.subr.mxu0 0.0
        %1701 = vmatpush2.msra.mxu0 0.0
        %1702 = vmatprep.subr.mxu0 0.0
        %1703 = vmatpush2.msra.mxu0 0.0
        %1704 = vmatprep.mubr.f32.mxu0 0.0
        %1705 = vmatmul.mubr.f32.gmra.mxu0 %v1561
        %v1706 = vpop.f32.mrf.mxu0
        %v1707 = vadd.f32 0.0, %v1706
        %v1708 = vpop.f32.mrf.mxu0
        %1709 = vdwg.mxu0
        %v1710 = vadd.f32 %v1529, %v1636
        %v1711 = vadd.f32 %v1530, %v1638
        %v1712 = vadd.f32 %v1531, %v1707
        %s1713 = scalar_lea.vmem %s4, 24
        %v1714 = vld [vmem:[%s1713] sm:$0x7]
        %1715 = vrot.lane.b32.xlu0 %v643, 88
        %v1716 = vpop.permute.xlu0 %1715
        %1717 = vrot.lane.b32.xlu0 %v644, 88
        %v1718 = vpop.permute.xlu0 %1717
        %1719 = vrot.lane.b32.xlu0 %v645, 88
        %v1720 = vpop.permute.xlu0 %1719
        %1721 = vrot.lane.b32.xlu0 %v651, 88
        %v1722 = vpop.permute.xlu0 %1721
        %1723 = vrot.lane.b32.xlu0 %v646, 88
        %v1724 = vpop.permute.xlu0 %1723
        %1725 = vrot.lane.b32.xlu0 %v647, 88
        %v1726 = vpop.permute.xlu0 %1725
        %1727 = vrot.lane.b32.xlu0 %v648, 88
        %v1728 = vpop.permute.xlu0 %1727
        %1729 = vrot.lane.b32.xlu0 %v652, 88
        %v1730 = vpop.permute.xlu0 %1729
        %vm1731 = vcmask 719872
        %v1732 = vsel %vm1731, %v1716, %v1718
        %v1733 = vsel %vm1731, %v1718, %v1720
        %v1734 = vsel %vm1731, %v1720, %v1722
        %v1735 = vsel %vm1731, %v1724, %v1726
        %v1736 = vsel %vm1731, %v1726, %v1728
        %v1737 = vsel %vm1731, %v1728, %v1730
        %v1742 = vsel %vm687, %v1714, 0
        %v1744 = vsel %vm691, %v1735, 0
        %v1746 = vsel %vm691, %v1736, 0
        %v1748 = vsel %vm691, %v1737, 0
        %1750 = vmatprep.subr.mxu0 0.0
        %1751 = vmatpush1.msra.mxu0 0.0
        %1752 = vmatprep.subr.mxu0 0.0
        %1753 = vmatpush1.msra.mxu0 0.0
        %1754 = vmatprep.subr.mxu0 0.0
        %1755 = vmatpush1.msra.mxu0 0.0
        %1756 = vmatprep.subr.mxu0 0.0
        %1757 = vmatpush1.msra.mxu0 0.0
        %1758 = vmatprep.subr.mxu0 0.0
        %1759 = vmatpush1.msra.mxu0 0.0
        %1760 = vmatprep.subr.mxu0 0.0
        %1761 = vmatpush1.msra.mxu0 0.0
        %1762 = vmatprep.subr.mxu0 0.0
        %1763 = vmatpush1.msra.mxu0 0.0
        %1764 = vmatprep.subr.mxu0 0.0
        %1765 = vmatpush1.msra.mxu0 0.0
        %1766 = vmatprep.subr.mxu0 0.0
        %1767 = vmatpush1.msra.mxu0 0.0
        %1768 = vmatprep.subr.mxu0 0.0
        %1769 = vmatpush1.msra.mxu0 0.0
        %1770 = vmatprep.subr.mxu0 0.0
        %1771 = vmatpush1.msra.mxu0 0.0
        %1772 = vmatprep.subr.mxu0 0.0
        %1773 = vmatpush1.msra.mxu0 0.0
        %1774 = vmatprep.subr.mxu0 0.0
        %1775 = vmatpush1.msra.mxu0 0.0
        %1776 = vmatprep.subr.mxu0 0.0
        %1777 = vmatpush1.msra.mxu0 0.0
        %1778 = vmatprep.subr.mxu0 %v1746
        %1779 = vmatpush1.msra.mxu0 %v1744
        %1780 = vmatprep.subr.mxu0 %v1733
        %1781 = vmatpush1.msra.mxu0 %v1732
        %1782 = vmatprep.subr.mxu0 0.0
        %1783 = vmatpush2.msra.mxu0 0.0
        %1784 = vmatprep.subr.mxu0 0.0
        %1785 = vmatpush2.msra.mxu0 0.0
        %1786 = vmatprep.subr.mxu0 0.0
        %1787 = vmatpush2.msra.mxu0 0.0
        %1788 = vmatprep.subr.mxu0 0.0
        %1789 = vmatpush2.msra.mxu0 0.0
        %1790 = vmatprep.subr.mxu0 0.0
        %1791 = vmatpush2.msra.mxu0 0.0
        %1792 = vmatprep.subr.mxu0 0.0
        %1793 = vmatpush2.msra.mxu0 0.0
        %1794 = vmatprep.subr.mxu0 0.0
        %1795 = vmatpush2.msra.mxu0 0.0
        %1796 = vmatprep.subr.mxu0 0.0
        %1797 = vmatpush2.msra.mxu0 0.0
        %1798 = vmatprep.subr.mxu0 0.0
        %1799 = vmatpush2.msra.mxu0 0.0
        %1800 = vmatprep.subr.mxu0 0.0
        %1801 = vmatpush2.msra.mxu0 0.0
        %1802 = vmatprep.subr.mxu0 0.0
        %1803 = vmatpush2.msra.mxu0 0.0
        %1804 = vmatprep.subr.mxu0 0.0
        %1805 = vmatpush2.msra.mxu0 0.0
        %1806 = vmatprep.subr.mxu0 0.0
        %1807 = vmatpush2.msra.mxu0 0.0
        %1808 = vmatprep.subr.mxu0 0.0
        %1809 = vmatpush2.msra.mxu0 0.0
        %1810 = vmatprep.subr.mxu0 0.0
        %1811 = vmatpush2.msra.mxu0 0.0
        %1812 = vmatprep.subr.mxu0 0.0
        %1813 = vmatpush2.msra.mxu0 0.0
        %1814 = vmatprep.mubr.f32.mxu0 0.0
        %1815 = vmatmul.mubr.f32.gmra.mxu0 %v1742
        %v1816 = vpop.f32.mrf.mxu0
        %v1817 = vadd.f32 0.0, %v1816
        %v1818 = vpop.f32.mrf.mxu0
        %v1819 = vadd.f32 0.0, %v1818
        %1820 = vdwg.mxu0
        %1821 = vmatprep.subr.mxu0 0.0
        %1822 = vmatpush1.msra.mxu0 0.0
        %1823 = vmatprep.subr.mxu0 0.0
        %1824 = vmatpush1.msra.mxu0 0.0
        %1825 = vmatprep.subr.mxu0 0.0
        %1826 = vmatpush1.msra.mxu0 0.0
        %1827 = vmatprep.subr.mxu0 0.0
        %1828 = vmatpush1.msra.mxu0 0.0
        %1829 = vmatprep.subr.mxu0 0.0
        %1830 = vmatpush1.msra.mxu0 0.0
        %1831 = vmatprep.subr.mxu0 0.0
        %1832 = vmatpush1.msra.mxu0 0.0
        %1833 = vmatprep.subr.mxu0 0.0
        %1834 = vmatpush1.msra.mxu0 0.0
        %1835 = vmatprep.subr.mxu0 0.0
        %1836 = vmatpush1.msra.mxu0 0.0
        %1837 = vmatprep.subr.mxu0 0.0
        %1838 = vmatpush1.msra.mxu0 0.0
        %1839 = vmatprep.subr.mxu0 0.0
        %1840 = vmatpush1.msra.mxu0 0.0
        %1841 = vmatprep.subr.mxu0 0.0
        %1842 = vmatpush1.msra.mxu0 0.0
        %1843 = vmatprep.subr.mxu0 0.0
        %1844 = vmatpush1.msra.mxu0 0.0
        %1845 = vmatprep.subr.mxu0 0.0
        %1846 = vmatpush1.msra.mxu0 0.0
        %1847 = vmatprep.subr.mxu0 0.0
        %1848 = vmatpush1.msra.mxu0 0.0
        %1849 = vmatprep.subr.mxu0 0.0
        %1850 = vmatpush1.msra.mxu0 %v1748
        %1851 = vmatprep.subr.mxu0 0.0
        %1852 = vmatpush1.msra.mxu0 %v1734
        %1853 = vmatprep.subr.mxu0 0.0
        %1854 = vmatpush2.msra.mxu0 0.0
        %1855 = vmatprep.subr.mxu0 0.0
        %1856 = vmatpush2.msra.mxu0 0.0
        %1857 = vmatprep.subr.mxu0 0.0
        %1858 = vmatpush2.msra.mxu0 0.0
        %1859 = vmatprep.subr.mxu0 0.0
        %1860 = vmatpush2.msra.mxu0 0.0
        %1861 = vmatprep.subr.mxu0 0.0
        %1862 = vmatpush2.msra.mxu0 0.0
        %1863 = vmatprep.subr.mxu0 0.0
        %1864 = vmatpush2.msra.mxu0 0.0
        %1865 = vmatprep.subr.mxu0 0.0
        %1866 = vmatpush2.msra.mxu0 0.0
        %1867 = vmatprep.subr.mxu0 0.0
        %1868 = vmatpush2.msra.mxu0 0.0
        %1869 = vmatprep.subr.mxu0 0.0
        %1870 = vmatpush2.msra.mxu0 0.0
        %1871 = vmatprep.subr.mxu0 0.0
        %1872 = vmatpush2.msra.mxu0 0.0
        %1873 = vmatprep.subr.mxu0 0.0
        %1874 = vmatpush2.msra.mxu0 0.0
        %1875 = vmatprep.subr.mxu0 0.0
        %1876 = vmatpush2.msra.mxu0 0.0
        %1877 = vmatprep.subr.mxu0 0.0
        %1878 = vmatpush2.msra.mxu0 0.0
        %1879 = vmatprep.subr.mxu0 0.0
        %1880 = vmatpush2.msra.mxu0 0.0
        %1881 = vmatprep.subr.mxu0 0.0
        %1882 = vmatpush2.msra.mxu0 0.0
        %1883 = vmatprep.subr.mxu0 0.0
        %1884 = vmatpush2.msra.mxu0 0.0
        %1885 = vmatprep.mubr.f32.mxu0 0.0
        %1886 = vmatmul.mubr.f32.gmra.mxu0 %v1742
        %v1887 = vpop.f32.mrf.mxu0
        %v1888 = vadd.f32 0.0, %v1887
        %v1889 = vpop.f32.mrf.mxu0
        %1890 = vdwg.mxu0
        %v1891 = vadd.f32 %v1710, %v1817
        %v1892 = vadd.f32 %v1711, %v1819
        %v1893 = vadd.f32 %v1712, %v1888
        %s1894 = scalar_lea.vmem %s4, 28
        %v1895 = vld [vmem:[%s1894] sm:$0x7]
        %1896 = vrot.lane.b32.xlu0 %v643, 87
        %v1897 = vpop.permute.xlu0 %1896
        %1898 = vrot.lane.b32.xlu0 %v644, 87
        %v1899 = vpop.permute.xlu0 %1898
        %1900 = vrot.lane.b32.xlu0 %v645, 87
        %v1901 = vpop.permute.xlu0 %1900
        %1902 = vrot.lane.b32.xlu0 %v651, 87
        %v1903 = vpop.permute.xlu0 %1902
        %1904 = vrot.lane.b32.xlu0 %v646, 87
        %v1905 = vpop.permute.xlu0 %1904
        %1906 = vrot.lane.b32.xlu0 %v647, 87
        %v1907 = vpop.permute.xlu0 %1906
        %1908 = vrot.lane.b32.xlu0 %v648, 87
        %v1909 = vpop.permute.xlu0 %1908
        %1910 = vrot.lane.b32.xlu0 %v652, 87
        %v1911 = vpop.permute.xlu0 %1910
        %vm1912 = vcmask 711680
        %v1913 = vsel %vm1912, %v1897, %v1899
        %v1914 = vsel %vm1912, %v1899, %v1901
        %v1915 = vsel %vm1912, %v1901, %v1903
        %v1916 = vsel %vm1912, %v1905, %v1907
        %v1917 = vsel %vm1912, %v1907, %v1909
        %v1918 = vsel %vm1912, %v1909, %v1911
        %v1923 = vsel %vm687, %v1895, 0
        %v1925 = vsel %vm691, %v1916, 0
        %v1927 = vsel %vm691, %v1917, 0
        %v1929 = vsel %vm691, %v1918, 0
        %1931 = vmatprep.subr.mxu0 0.0
        %1932 = vmatpush1.msra.mxu0 0.0
        %1933 = vmatprep.subr.mxu0 0.0
        %1934 = vmatpush1.msra.mxu0 0.0
        %1935 = vmatprep.subr.mxu0 0.0
        %1936 = vmatpush1.msra.mxu0 0.0
        %1937 = vmatprep.subr.mxu0 0.0
        %1938 = vmatpush1.msra.mxu0 0.0
        %1939 = vmatprep.subr.mxu0 0.0
        %1940 = vmatpush1.msra.mxu0 0.0
        %1941 = vmatprep.subr.mxu0 0.0
        %1942 = vmatpush1.msra.mxu0 0.0
        %1943 = vmatprep.subr.mxu0 0.0
        %1944 = vmatpush1.msra.mxu0 0.0
        %1945 = vmatprep.subr.mxu0 0.0
        %1946 = vmatpush1.msra.mxu0 0.0
        %1947 = vmatprep.subr.mxu0 0.0
        %1948 = vmatpush1.msra.mxu0 0.0
        %1949 = vmatprep.subr.mxu0 0.0
        %1950 = vmatpush1.msra.mxu0 0.0
        %1951 = vmatprep.subr.mxu0 0.0
        %1952 = vmatpush1.msra.mxu0 0.0
        %1953 = vmatprep.subr.mxu0 0.0
        %1954 = vmatpush1.msra.mxu0 0.0
        %1955 = vmatprep.subr.mxu0 0.0
        %1956 = vmatpush1.msra.mxu0 0.0
        %1957 = vmatprep.subr.mxu0 0.0
        %1958 = vmatpush1.msra.mxu0 0.0
        %1959 = vmatprep.subr.mxu0 %v1927
        %1960 = vmatpush1.msra.mxu0 %v1925
        %1961 = vmatprep.subr.mxu0 %v1914
        %1962 = vmatpush1.msra.mxu0 %v1913
        %1963 = vmatprep.subr.mxu0 0.0
        %1964 = vmatpush2.msra.mxu0 0.0
        %1965 = vmatprep.subr.mxu0 0.0
        %1966 = vmatpush2.msra.mxu0 0.0
        %1967 = vmatprep.subr.mxu0 0.0
        %1968 = vmatpush2.msra.mxu0 0.0
        %1969 = vmatprep.subr.mxu0 0.0
        %1970 = vmatpush2.msra.mxu0 0.0
        %1971 = vmatprep.subr.mxu0 0.0
        %1972 = vmatpush2.msra.mxu0 0.0
        %1973 = vmatprep.subr.mxu0 0.0
        %1974 = vmatpush2.msra.mxu0 0.0
        %1975 = vmatprep.subr.mxu0 0.0
        %1976 = vmatpush2.msra.mxu0 0.0
        %1977 = vmatprep.subr.mxu0 0.0
        %1978 = vmatpush2.msra.mxu0 0.0
        %1979 = vmatprep.subr.mxu0 0.0
        %1980 = vmatpush2.msra.mxu0 0.0
        %1981 = vmatprep.subr.mxu0 0.0
        %1982 = vmatpush2.msra.mxu0 0.0
        %1983 = vmatprep.subr.mxu0 0.0
        %1984 = vmatpush2.msra.mxu0 0.0
        %1985 = vmatprep.subr.mxu0 0.0
        %1986 = vmatpush2.msra.mxu0 0.0
        %1987 = vmatprep.subr.mxu0 0.0
        %1988 = vmatpush2.msra.mxu0 0.0
        %1989 = vmatprep.subr.mxu0 0.0
        %1990 = vmatpush2.msra.mxu0 0.0
        %1991 = vmatprep.subr.mxu0 0.0
        %1992 = vmatpush2.msra.mxu0 0.0
        %1993 = vmatprep.subr.mxu0 0.0
        %1994 = vmatpush2.msra.mxu0 0.0
        %1995 = vmatprep.mubr.f32.mxu0 0.0
        %1996 = vmatmul.mubr.f32.gmra.mxu0 %v1923
        %v1997 = vpop.f32.mrf.mxu0
        %v1998 = vadd.f32 0.0, %v1997
        %v1999 = vpop.f32.mrf.mxu0
        %v2000 = vadd.f32 0.0, %v1999
        %2001 = vdwg.mxu0
        %2002 = vmatprep.subr.mxu0 0.0
        %2003 = vmatpush1.msra.mxu0 0.0
        %2004 = vmatprep.subr.mxu0 0.0
        %2005 = vmatpush1.msra.mxu0 0.0
        %2006 = vmatprep.subr.mxu0 0.0
        %2007 = vmatpush1.msra.mxu0 0.0
        %2008 = vmatprep.subr.mxu0 0.0
        %2009 = vmatpush1.msra.mxu0 0.0
        %2010 = vmatprep.subr.mxu0 0.0
        %2011 = vmatpush1.msra.mxu0 0.0
        %2012 = vmatprep.subr.mxu0 0.0
        %2013 = vmatpush1.msra.mxu0 0.0
        %2014 = vmatprep.subr.mxu0 0.0
        %2015 = vmatpush1.msra.mxu0 0.0
        %2016 = vmatprep.subr.mxu0 0.0
        %2017 = vmatpush1.msra.mxu0 0.0
        %2018 = vmatprep.subr.mxu0 0.0
        %2019 = vmatpush1.msra.mxu0 0.0
        %2020 = vmatprep.subr.mxu0 0.0
        %2021 = vmatpush1.msra.mxu0 0.0
        %2022 = vmatprep.subr.mxu0 0.0
        %2023 = vmatpush1.msra.mxu0 0.0
        %2024 = vmatprep.subr.mxu0 0.0
        %2025 = vmatpush1.msra.mxu0 0.0
        %2026 = vmatprep.subr.mxu0 0.0
        %2027 = vmatpush1.msra.mxu0 0.0
        %2028 = vmatprep.subr.mxu0 0.0
        %2029 = vmatpush1.msra.mxu0 0.0
        %2030 = vmatprep.subr.mxu0 0.0
        %2031 = vmatpush1.msra.mxu0 %v1929
        %2032 = vmatprep.subr.mxu0 0.0
        %2033 = vmatpush1.msra.mxu0 %v1915
        %2034 = vmatprep.subr.mxu0 0.0
        %2035 = vmatpush2.msra.mxu0 0.0
        %2036 = vmatprep.subr.mxu0 0.0
        %2037 = vmatpush2.msra.mxu0 0.0
        %2038 = vmatprep.subr.mxu0 0.0
        %2039 = vmatpush2.msra.mxu0 0.0
        %2040 = vmatprep.subr.mxu0 0.0
        %2041 = vmatpush2.msra.mxu0 0.0
        %2042 = vmatprep.subr.mxu0 0.0
        %2043 = vmatpush2.msra.mxu0 0.0
        %2044 = vmatprep.subr.mxu0 0.0
        %2045 = vmatpush2.msra.mxu0 0.0
        %2046 = vmatprep.subr.mxu0 0.0
        %2047 = vmatpush2.msra.mxu0 0.0
        %2048 = vmatprep.subr.mxu0 0.0
        %2049 = vmatpush2.msra.mxu0 0.0
        %2050 = vmatprep.subr.mxu0 0.0
        %2051 = vmatpush2.msra.mxu0 0.0
        %2052 = vmatprep.subr.mxu0 0.0
        %2053 = vmatpush2.msra.mxu0 0.0
        %2054 = vmatprep.subr.mxu0 0.0
        %2055 = vmatpush2.msra.mxu0 0.0
        %2056 = vmatprep.subr.mxu0 0.0
        %2057 = vmatpush2.msra.mxu0 0.0
        %2058 = vmatprep.subr.mxu0 0.0
        %2059 = vmatpush2.msra.mxu0 0.0
        %2060 = vmatprep.subr.mxu0 0.0
        %2061 = vmatpush2.msra.mxu0 0.0
        %2062 = vmatprep.subr.mxu0 0.0
        %2063 = vmatpush2.msra.mxu0 0.0
        %2064 = vmatprep.subr.mxu0 0.0
        %2065 = vmatpush2.msra.mxu0 0.0
        %2066 = vmatprep.mubr.f32.mxu0 0.0
        %2067 = vmatmul.mubr.f32.gmra.mxu0 %v1923
        %v2068 = vpop.f32.mrf.mxu0
        %v2069 = vadd.f32 0.0, %v2068
        %v2070 = vpop.f32.mrf.mxu0
        %2071 = vdwg.mxu0
        %v2072 = vadd.f32 %v1891, %v1998
        %v2073 = vadd.f32 %v1892, %v2000
        %v2074 = vadd.f32 %v1893, %v2069
        %s2075 = scalar_lea.vmem %s4, 32
        %v2076 = vld [vmem:[%s2075] sm:$0x7]
        %2077 = vrot.lane.b32.xlu0 %v643, 86
        %v2078 = vpop.permute.xlu0 %2077
        %2079 = vrot.lane.b32.xlu0 %v644, 86
        %v2080 = vpop.permute.xlu0 %2079
        %2081 = vrot.lane.b32.xlu0 %v645, 86
        %v2082 = vpop.permute.xlu0 %2081
        %2083 = vrot.lane.b32.xlu0 %v651, 86
        %v2084 = vpop.permute.xlu0 %2083
        %2085 = vrot.lane.b32.xlu0 %v646, 86
        %v2086 = vpop.permute.xlu0 %2085
        %2087 = vrot.lane.b32.xlu0 %v647, 86
        %v2088 = vpop.permute.xlu0 %2087
        %2089 = vrot.lane.b32.xlu0 %v648, 86
        %v2090 = vpop.permute.xlu0 %2089
        %2091 = vrot.lane.b32.xlu0 %v652, 86
        %v2092 = vpop.permute.xlu0 %2091
        %vm2093 = vcmask 703488
        %v2094 = vsel %vm2093, %v2078, %v2080
        %v2095 = vsel %vm2093, %v2080, %v2082
        %v2096 = vsel %vm2093, %v2082, %v2084
        %v2097 = vsel %vm2093, %v2086, %v2088
        %v2098 = vsel %vm2093, %v2088, %v2090
        %v2099 = vsel %vm2093, %v2090, %v2092
        %v2104 = vsel %vm687, %v2076, 0
        %v2106 = vsel %vm691, %v2097, 0
        %v2108 = vsel %vm691, %v2098, 0
        %v2110 = vsel %vm691, %v2099, 0
        %2112 = vmatprep.subr.mxu0 0.0
        %2113 = vmatpush1.msra.mxu0 0.0
        %2114 = vmatprep.subr.mxu0 0.0
        %2115 = vmatpush1.msra.mxu0 0.0
        %2116 = vmatprep.subr.mxu0 0.0
        %2117 = vmatpush1.msra.mxu0 0.0
        %2118 = vmatprep.subr.mxu0 0.0
        %2119 = vmatpush1.msra.mxu0 0.0
        %2120 = vmatprep.subr.mxu0 0.0
        %2121 = vmatpush1.msra.mxu0 0.0
        %2122 = vmatprep.subr.mxu0 0.0
        %2123 = vmatpush1.msra.mxu0 0.0
        %2124 = vmatprep.subr.mxu0 0.0
        %2125 = vmatpush1.msra.mxu0 0.0
        %2126 = vmatprep.subr.mxu0 0.0
        %2127 = vmatpush1.msra.mxu0 0.0
        %2128 = vmatprep.subr.mxu0 0.0
        %2129 = vmatpush1.msra.mxu0 0.0
        %2130 = vmatprep.subr.mxu0 0.0
        %2131 = vmatpush1.msra.mxu0 0.0
        %2132 = vmatprep.subr.mxu0 0.0
        %2133 = vmatpush1.msra.mxu0 0.0
        %2134 = vmatprep.subr.mxu0 0.0
        %2135 = vmatpush1.msra.mxu0 0.0
        %2136 = vmatprep.subr.mxu0 0.0
        %2137 = vmatpush1.msra.mxu0 0.0
        %2138 = vmatprep.subr.mxu0 0.0
        %2139 = vmatpush1.msra.mxu0 0.0
        %2140 = vmatprep.subr.mxu0 %v2108
        %2141 = vmatpush1.msra.mxu0 %v2106
        %2142 = vmatprep.subr.mxu0 %v2095
        %2143 = vmatpush1.msra.mxu0 %v2094
        %2144 = vmatprep.subr.mxu0 0.0
        %2145 = vmatpush2.msra.mxu0 0.0
        %2146 = vmatprep.subr.mxu0 0.0
        %2147 = vmatpush2.msra.mxu0 0.0
        %2148 = vmatprep.subr.mxu0 0.0
        %2149 = vmatpush2.msra.mxu0 0.0
        %2150 = vmatprep.subr.mxu0 0.0
        %2151 = vmatpush2.msra.mxu0 0.0
        %2152 = vmatprep.subr.mxu0 0.0
        %2153 = vmatpush2.msra.mxu0 0.0
        %2154 = vmatprep.subr.mxu0 0.0
        %2155 = vmatpush2.msra.mxu0 0.0
        %2156 = vmatprep.subr.mxu0 0.0
        %2157 = vmatpush2.msra.mxu0 0.0
        %2158 = vmatprep.subr.mxu0 0.0
        %2159 = vmatpush2.msra.mxu0 0.0
        %2160 = vmatprep.subr.mxu0 0.0
        %2161 = vmatpush2.msra.mxu0 0.0
        %2162 = vmatprep.subr.mxu0 0.0
        %2163 = vmatpush2.msra.mxu0 0.0
        %2164 = vmatprep.subr.mxu0 0.0
        %2165 = vmatpush2.msra.mxu0 0.0
        %2166 = vmatprep.subr.mxu0 0.0
        %2167 = vmatpush2.msra.mxu0 0.0
        %2168 = vmatprep.subr.mxu0 0.0
        %2169 = vmatpush2.msra.mxu0 0.0
        %2170 = vmatprep.subr.mxu0 0.0
        %2171 = vmatpush2.msra.mxu0 0.0
        %2172 = vmatprep.subr.mxu0 0.0
        %2173 = vmatpush2.msra.mxu0 0.0
        %2174 = vmatprep.subr.mxu0 0.0
        %2175 = vmatpush2.msra.mxu0 0.0
        %2176 = vmatprep.mubr.f32.mxu0 0.0
        %2177 = vmatmul.mubr.f32.gmra.mxu0 %v2104
        %v2178 = vpop.f32.mrf.mxu0
        %v2179 = vadd.f32 0.0, %v2178
        %v2180 = vpop.f32.mrf.mxu0
        %v2181 = vadd.f32 0.0, %v2180
        %2182 = vdwg.mxu0
        %2183 = vmatprep.subr.mxu0 0.0
        %2184 = vmatpush1.msra.mxu0 0.0
        %2185 = vmatprep.subr.mxu0 0.0
        %2186 = vmatpush1.msra.mxu0 0.0
        %2187 = vmatprep.subr.mxu0 0.0
        %2188 = vmatpush1.msra.mxu0 0.0
        %2189 = vmatprep.subr.mxu0 0.0
        %2190 = vmatpush1.msra.mxu0 0.0
        %2191 = vmatprep.subr.mxu0 0.0
        %2192 = vmatpush1.msra.mxu0 0.0
        %2193 = vmatprep.subr.mxu0 0.0
        %2194 = vmatpush1.msra.mxu0 0.0
        %2195 = vmatprep.subr.mxu0 0.0
        %2196 = vmatpush1.msra.mxu0 0.0
        %2197 = vmatprep.subr.mxu0 0.0
        %2198 = vmatpush1.msra.mxu0 0.0
        %2199 = vmatprep.subr.mxu0 0.0
        %2200 = vmatpush1.msra.mxu0 0.0
        %2201 = vmatprep.subr.mxu0 0.0
        %2202 = vmatpush1.msra.mxu0 0.0
        %2203 = vmatprep.subr.mxu0 0.0
        %2204 = vmatpush1.msra.mxu0 0.0
        %2205 = vmatprep.subr.mxu0 0.0
        %2206 = vmatpush1.msra.mxu0 0.0
        %2207 = vmatprep.subr.mxu0 0.0
        %2208 = vmatpush1.msra.mxu0 0.0
        %2209 = vmatprep.subr.mxu0 0.0
        %2210 = vmatpush1.msra.mxu0 0.0
        %2211 = vmatprep.subr.mxu0 0.0
        %2212 = vmatpush1.msra.mxu0 %v2110
        %2213 = vmatprep.subr.mxu0 0.0
        %2214 = vmatpush1.msra.mxu0 %v2096
        %2215 = vmatprep.subr.mxu0 0.0
        %2216 = vmatpush2.msra.mxu0 0.0
        %2217 = vmatprep.subr.mxu0 0.0
        %2218 = vmatpush2.msra.mxu0 0.0
        %2219 = vmatprep.subr.mxu0 0.0
        %2220 = vmatpush2.msra.mxu0 0.0
        %2221 = vmatprep.subr.mxu0 0.0
        %2222 = vmatpush2.msra.mxu0 0.0
        %2223 = vmatprep.subr.mxu0 0.0
        %2224 = vmatpush2.msra.mxu0 0.0
        %2225 = vmatprep.subr.mxu0 0.0
        %2226 = vmatpush2.msra.mxu0 0.0
        %2227 = vmatprep.subr.mxu0 0.0
        %2228 = vmatpush2.msra.mxu0 0.0
        %2229 = vmatprep.subr.mxu0 0.0
        %2230 = vmatpush2.msra.mxu0 0.0
        %2231 = vmatprep.subr.mxu0 0.0
        %2232 = vmatpush2.msra.mxu0 0.0
        %2233 = vmatprep.subr.mxu0 0.0
        %2234 = vmatpush2.msra.mxu0 0.0
        %2235 = vmatprep.subr.mxu0 0.0
        %2236 = vmatpush2.msra.mxu0 0.0
        %2237 = vmatprep.subr.mxu0 0.0
        %2238 = vmatpush2.msra.mxu0 0.0
        %2239 = vmatprep.subr.mxu0 0.0
        %2240 = vmatpush2.msra.mxu0 0.0
        %2241 = vmatprep.subr.mxu0 0.0
        %2242 = vmatpush2.msra.mxu0 0.0
        %2243 = vmatprep.subr.mxu0 0.0
        %2244 = vmatpush2.msra.mxu0 0.0
        %2245 = vmatprep.subr.mxu0 0.0
        %2246 = vmatpush2.msra.mxu0 0.0
        %2247 = vmatprep.mubr.f32.mxu0 0.0
        %2248 = vmatmul.mubr.f32.gmra.mxu0 %v2104
        %v2249 = vpop.f32.mrf.mxu0
        %v2250 = vadd.f32 0.0, %v2249
        %v2251 = vpop.f32.mrf.mxu0
        %2252 = vdwg.mxu0
        %v2253 = vadd.f32 %v2072, %v2179
        %v2254 = vadd.f32 %v2073, %v2181
        %v2255 = vadd.f32 %v2074, %v2250
        %v2256 = vld [vmem:[%s6] sm:$0x7]
        %v2257 = vld [vmem:[%s5] sm:$0x7]
        %2259 = vset.pattern.permute.xlu0 0
        %2260 = vperm.xlu0 %2259, %v2257
        %v2261 = vpop.permute.xlu0 %2260
        %v2263 = vadd.f32 %v2253, %v2261
        %v2264 = vadd.f32 %v2254, %v2261
        %v2265 = vadd.f32 %v2255, %v2261
        %v2266 = vmax.f32 %v2263, 0.0
        %v2267 = vmax.f32 %v2264, 0.0
        %v2268 = vmax.f32 %v2265, 0.0
        %v2270 = vlaneseq
        %v2271 = vshrl.u32 %v2270, 7
        %v2272 = vsub.s32 0, %v2271
        %v2273 = vrot.slane %v2256, %v2272
        %v2274 = vlaneseq
        %v2275 = vshrl.u32 %v2274, 7
        %v2276 = vsub.s32 1, %v2275
        %v2277 = vrot.slane %v2256, %v2276
        %v2278 = vlaneseq
        %v2279 = vshrl.u32 %v2278, 7
        %v2280 = vsub.s32 2, %v2279
        %v2281 = vrot.slane %v2256, %v2280
        %v2285 = vmul.f32 %v2273, %v2266
        %v2286 = vmul.f32 %v2277, %v2267
        %v2287 = vmul.f32 %v2281, %v2268
        %vm2288 = vcmask 1042432
        %v2289 = vsel %vm2288, %v2285, 0.0
        %v2290 = vsel %vm2288, %v2286, 0.0
        %v2291 = vadd.f32 %v2289, %v2290
        %v2292 = vsel %vm2288, %v2287, 0.0
        %v2293 = vadd.f32 %v2291, %v2292
        %2294 = vadd.xlane.f32.xlu0 %v2293
        %v2295 = vpop.xlane.xlu0 %2294
        %v2296 = vld [vmem:[%s7] sm:$0x7]
        %v2297 = vmul.f32 %v2295, %v2296
        %vm2298 = vcmask 75776
        %v2299 = vsel %vm2298, %v2297, 0.0
        %v2300 = vrot.slane %v2299, 4
        %v2301 = vadd.f32 %v2299, %v2300
        %v2302 = vrot.slane %v2301, 2
        %v2303 = vadd.f32 %v2301, %v2302
        %v2304 = vrot.slane %v2303, 1
        %v2305 = vadd.f32 %v2303, %v2304
        %v2306 = vld [vmem:[%s8] sm:$0x1]
        %v2307 = vadd.f32 %v2305, %v2306
        %vm2308 = vcmask 73728
        %2309 = vst.msk [vmem:[%s324] sm:$0x1] %vm2308, %v2307
        %s2310 = sand.u32 %s225, 1
        %s2311 = scalar_lea.sflag [#allocation4], %s2310
        %s2312 = sand.u32 %s225, 1
        %s2313 = scalar_lea.vmem [#allocation3], %s2312
        // Predicated region
        $region57: #{tpu_custom_call.1} parent=55 // pred_check
          %p2314 = pneg %p235
        $region58: #{tpu_custom_call.1} parent=55 // pred_check_branch
          %2316 = sbr.rel (%p2314) target = $region60
        $region59: #{tpu_custom_call.1} parent=55 // pred_region
          %s2318 = ssub.s32 16, 16
          %2319 = vsyncadd %s2311, %s2318
          %s2320 = smul.addr %s23, 16
          %s2321 = scalar_lea.hbm %s9, %s2320
          %s2323 = sshll.u32 %s2313, 4
          %s2324 = int_to_ptr.vmem [resolvable:$true] %s2323
          %2326 = dma.vmem_to_hbm [thread:$0]  %s2324, 16, %s2321, %s2311
        $region60: #{tpu_custom_call.1} parent=55 // pred_fallthru
          _
      $region56: #{tpu_custom_call.1} parent=5 // pred_fallthru
        _
      %p2327 = scmp.le.s32.totalorder 2, %s18
      // Predicated region
      $region61: #{tpu_custom_call.1} parent=5 // pred_check
        %p2328 = pneg %p2327
      $region62: #{tpu_custom_call.1} parent=5 // pred_check_branch
        %2330 = sbr.rel (%p2328) target = $region64
      $region63: #{tpu_custom_call.1} parent=5 // pred_region
        %s2331 = ssub.s32 %s18, 2
        // Predicated region
        $region65: #{tpu_custom_call.1} parent=63 // pred_check
          %p2332 = pneg %p241
        $region66: #{tpu_custom_call.1} parent=63 // pred_check_branch
          %2334 = sbr.rel (%p2332) target = $region68
        $region67: #{tpu_custom_call.1} parent=63 // pred_region
          %s2335 = sand.u32 %s226, 1
          %s2336 = scalar_lea.sflag [#allocation4], %s2335
          %s2337 = sand.u32 %s226, 1
          %s2338 = scalar_lea.vmem [#allocation3], %s2337
          %2339 = dma.done %s2336, 16
        $region68: #{tpu_custom_call.1} parent=63 // pred_fallthru
          _
      $region64: #{tpu_custom_call.1} parent=5 // pred_fallthru
        _
    $region6: #{tpu_custom_call.1} parent=1 // loop_footer
      %s22 = sadd.s32 1, %s18
    $region7: #{tpu_custom_call.1} parent=1 // loop_footer_branch
      %17 = sbr.rel target = $region3
    $region8: #{tpu_custom_call.1} parent=1 // loop_exit
      _
    %2340 = vsyncpa [#allocation4], 1
    %s2341 = scalar_lea.sflag [#allocation4], 1
    %2342 = vsyncpa %s2341, 1

</llo_original>
